<compile_context>
chip_gen: v5e
topology: v5e:2x2
jax: 0.10.0
libtpu: 0.0.40
codegen_flags: <defaults>
</compile_context>

<pallas_src>
import functools

import jax
import jax.numpy as jnp
from jax import lax
from jax.experimental import pallas as pl
from jax.experimental.pallas import tpu as pltpu

_EPS = 1e-5
# Scoped-VMEM cap: generous for v5e/v6e (128 MiB physical) while leaving
# headroom for double buffering on v7x (64 MiB physical).
_VMEM_LIMIT = 48 * 1024 * 1024


def _compiler_params(*semantics):
    return pltpu.CompilerParams(dimension_semantics=semantics,
                                vmem_limit_bytes=_VMEM_LIMIT)


# --------------------------------- kernels ----------------------------------
def _pass1_kernel(x_ref, w_ref, h0_ref, s1_ref, s2_ref):
    """conv1 (1x1) + skip projection (1x1), fused into one matmul, plus
    per-lane sum / sum-of-squares accumulation for the BN1 / BN_skip stats."""
    @pl.when(pl.program_id(0) == 0)
    def _():
        s1_ref[...] = jnp.zeros_like(s1_ref)
        s2_ref[...] = jnp.zeros_like(s2_ref)
    h0 = jnp.dot(x_ref[...], w_ref[...], preferred_element_type=jnp.float32)
    h0_ref[...] = h0.astype(h0_ref.dtype)
    s1_ref[...] += jnp.sum(h0, axis=0, keepdims=True)
    s2_ref[...] += jnp.sum(h0 * h0, axis=0, keepdims=True)


def _pass2_kernel(h0_ref, aff_ref, w2_ref, h2_ref, s1_ref, s2_ref, *, h):
    """BN1 (pre-folded per-lane scale/shift) + ReLU, then the 3x3 conv as ONE
    K=3*W*C matmul on [row-above | row | row-below] built with pltpu.roll on
    the sublane axis (image-boundary rows zeroed), plus BN2 stats."""
    @pl.when(pl.program_id(0) == 0)
    def _():
        s1_ref[...] = jnp.zeros_like(s1_ref)
        s2_ref[...] = jnp.zeros_like(s2_ref)
    aff = aff_ref[...]
    h1 = jnp.maximum(h0_ref[...].astype(jnp.float32) * aff[0:1, :]
                     + aff[1:2, :], 0.0)
    tile = h1.shape[0]
    yy = lax.broadcasted_iota(jnp.int32, h1.shape, 0) % h
    # Tiles contain whole images, so the cyclic roll never needs a cross-tile
    # halo: the rows it wraps are exactly the image-boundary rows we zero.
    up = jnp.where(yy != 0, pltpu.roll(h1, 1, axis=0), 0.0)           # y - 1
    dn = jnp.where(yy != h - 1, pltpu.roll(h1, tile - 1, axis=0), 0.0)  # y + 1
    h1cat = jnp.concatenate([up, h1, dn], axis=1).astype(jnp.bfloat16)
    acc = jnp.dot(h1cat, w2_ref[...], preferred_element_type=jnp.float32)
    h2_ref[...] = acc.astype(h2_ref.dtype)
    s1_ref[...] += jnp.sum(acc, axis=0, keepdims=True)
    s2_ref[...] += jnp.sum(acc * acc, axis=0, keepdims=True)


def _pass3_kernel(h2_ref, aff_ref, w3_ref, h3_ref, s1_ref, s2_ref):
    """BN2 + ReLU, conv3 (1x1), plus BN3 stats accumulation."""
    @pl.when(pl.program_id(0) == 0)
    def _():
        s1_ref[...] = jnp.zeros_like(s1_ref)
        s2_ref[...] = jnp.zeros_like(s2_ref)
    aff = aff_ref[...]
    h2 = jnp.maximum(h2_ref[...].astype(jnp.float32) * aff[0:1, :]
                     + aff[1:2, :], 0.0)
    h3 = jnp.dot(h2.astype(jnp.bfloat16), w3_ref[...],
                 preferred_element_type=jnp.float32)
    h3_ref[...] = h3.astype(h3_ref.dtype)
    s1_ref[...] += jnp.sum(h3, axis=0, keepdims=True)
    s2_ref[...] += jnp.sum(h3 * h3, axis=0, keepdims=True)


def _pass4_kernel(h3_ref, sk_ref, aff_ref, o_ref):
    """BN3 + BN_skip + residual add + final ReLU. Pure VPU, lane-dense store;
    no cross-tile state, so its grid axis is 'parallel' (v7x dual-TC)."""
    aff = aff_ref[...]
    h3 = h3_ref[...].astype(jnp.float32) * aff[0:1, :] + aff[1:2, :]
    sk = sk_ref[...].astype(jnp.float32) * aff[2:3, :] + aff[3:4, :]
    o_ref[...] = jnp.maximum(h3 + sk, 0.0)


# ------------------------- tiny between-pass glue ----------------------------
def _fold_stats(s1, s2, gamma, beta, count, w, c):
    """Per-lane (1, W*C) sums -> per-channel training-mode BN scale/shift,
    re-broadcast back to per-lane. All in f32 on scalar-sized arrays."""
    mean_c = s1.reshape(w, c).sum(axis=0) / count
    ex2_c = s2.reshape(w, c).sum(axis=0) / count
    var_c = ex2_c - mean_c * mean_c                 # biased var (training BN)
    scale_c = gamma * lax.rsqrt(var_c + _EPS)
    shift_c = beta - scale_c * mean_c
    scale = jnp.tile(scale_c, (w,)).reshape(1, w * c)
    shift = jnp.tile(shift_c, (w,)).reshape(1, w * c)
    return jnp.concatenate([scale, shift], axis=0)  # (2, W*C)


def _pick_images_per_tile(n, h, max_tile_rows):
    """Largest divisor d of n with d*h <= max_tile_rows and (d*h) % 8 == 0
    (tiles are whole images and sublane-aligned); fall back to a single tile
    (block == full array) if nothing qualifies."""
    best = None
    for d in range(1, n + 1):
        if n % d == 0 and d * h <= max_tile_rows and (d * h) % 8 == 0:
            best = d
    return best if best is not None else n


# --------------------------------- wrapper -----------------------------------
def residual_block_pallas(x_nchw, params, *, max_tile_rows=512):
    """x_nchw: (N, Cin, H, W) float32 (PyTorch layout). Returns NCHW output.

    max_tile_rows: row-tile target; ~512-1024 hits the HBM roofline on
    v5e/v6e, use roughly half on v7x (64 MiB VMEM, 2.3x HBM bandwidth)."""
    n, cin, h, w = x_nchw.shape
    c = params["w1"].shape[1]                                   # out_channels
    rows, wc, wcin = n * h, w * c, w * cin
    count = float(n * h * w)

    # Merged-lane scheme: W*C must fill whole 128-lane vregs so every block,
    # reduction and store is lane-dense. (For C >= 128 tile channels instead.)
    assert wc % 128 == 0, "W * out_channels must be a multiple of 128"

    ipt = _pick_images_per_tile(n, h, max_tile_rows)
    tile = ipt * h
    num_tiles = rows // tile

    f32, bf16 = jnp.float32, jnp.bfloat16

    # ---- one-time weight/layout plumbing (wrapper side, pure JAX) -----------
    # NCHW -> (N*H, W*Cin): one row per (image, y), lanes = merged (x, channel)
    x2d = jnp.transpose(x_nchw, (0, 2, 3, 1)).reshape(rows, wcin).astype(bf16)

    eye_w = jnp.eye(w, dtype=f32)

    def block_diag(wk):                        # (ci, co) -> (w*ci, w*co)
        ci, co = wk.shape
        return jnp.einsum("io,xy->xiyo", wk, eye_w).reshape(w * ci, w * co)

    def banded(w2_ky):                         # (3, c, c) -> (w*c, w*c)
        m = jnp.zeros((wc, wc), f32)
        for kx in range(3):                    # x_in = x_out + kx - 1
            s = jnp.eye(w, k=1 - kx, dtype=f32)
            m = m + jnp.einsum("io,xy->xiyo", w2_ky[kx], s).reshape(wc, wc)
        return m

    # conv1 + skip projection fused along the output-lane axis; bf16 weights
    # (default MXU precision rounds operands to bf16 anyway).
    m1s = jnp.concatenate([block_diag(params["w1"]),
                           block_diag(params["ws"])], axis=1).astype(bf16)
    m2 = jnp.concatenate([banded(params["w2"][ky]) for ky in range(3)],
                         axis=0).astype(bf16)          # (3*wc, wc): K=384 dot
    m3 = block_diag(params["w3"]).astype(bf16)         # (wc, wc)
    # NOTE: conv biases b1/b2/b3/bs are intentionally not used: a constant
    # per-channel bias cancels exactly under the training-mode BN that follows.

    def tiled_spec(width, lane_block=0):
        return pl.BlockSpec((tile, width), lambda i, lb=lane_block: (i, lb))

    def resident_spec(shape):
        return pl.BlockSpec(shape, lambda i, nd=len(shape): (0,) * nd)

    # ---- pass 1: conv1 + skip, BN1/BN_skip stats -----------------------------
    gs1 = pltpu.PrefetchScalarGridSpec(
        num_scalar_prefetch=0, grid=(num_tiles,),
        in_specs=[tiled_spec(wcin), resident_spec((wcin, 2 * wc))],
        out_specs=[tiled_spec(2 * wc),
                   resident_spec((1, 2 * wc)), resident_spec((1, 2 * wc))])
    h0, s1a, s2a = pl.pallas_call(
        _pass1_kernel,
        out_shape=(jax.ShapeDtypeStruct((rows, 2 * wc), bf16),
                   jax.ShapeDtypeStruct((1, 2 * wc), f32),
                   jax.ShapeDtypeStruct((1, 2 * wc), f32)),
        grid_spec=gs1,
        compiler_params=_compiler_params("arbitrary"),
    )(x2d, m1s)

    aff1 = _fold_stats(s1a[:, :wc], s2a[:, :wc],
                       params["g1"], params["be1"], count, w, c)   # (2, wc)
    affs = _fold_stats(s1a[:, wc:], s2a[:, wc:],
                       params["gs"], params["bes"], count, w, c)   # (2, wc)

    # ---- pass 2: BN1+ReLU, 3x3 conv, BN2 stats -------------------------------
    gs2 = pltpu.PrefetchScalarGridSpec(
        num_scalar_prefetch=0, grid=(num_tiles,),
        in_specs=[tiled_spec(wc, 0),            # h0[:, :wc]  (conv1 lanes)
                  resident_spec((2, wc)),       # [scale1; shift1]
                  resident_spec((3 * wc, wc))],
        out_specs=[tiled_spec(wc),
                   resident_spec((1, wc)), resident_spec((1, wc))])
    h2p, s1b, s2b = pl.pallas_call(
        functools.partial(_pass2_kernel, h=h),
        out_shape=(jax.ShapeDtypeStruct((rows, wc), bf16),
                   jax.ShapeDtypeStruct((1, wc), f32),
                   jax.ShapeDtypeStruct((1, wc), f32)),
        grid_spec=gs2,
        compiler_params=_compiler_params("arbitrary"),
    )(h0, aff1, m2)

    aff2 = _fold_stats(s1b, s2b, params["g2"], params["be2"], count, w, c)

    # ---- pass 3: BN2+ReLU, conv3, BN3 stats ----------------------------------
    gs3 = pltpu.PrefetchScalarGridSpec(
        num_scalar_prefetch=0, grid=(num_tiles,),
        in_specs=[tiled_spec(wc), resident_spec((2, wc)),
                  resident_spec((wc, wc))],
        out_specs=[tiled_spec(wc),
                   resident_spec((1, wc)), resident_spec((1, wc))])
    h3p, s1c, s2c = pl.pallas_call(
        _pass3_kernel,
        out_shape=(jax.ShapeDtypeStruct((rows, wc), bf16),
                   jax.ShapeDtypeStruct((1, wc), f32),
                   jax.ShapeDtypeStruct((1, wc), f32)),
        grid_spec=gs3,
        compiler_params=_compiler_params("arbitrary"),
    )(h2p, aff2, m3)

    aff3 = _fold_stats(s1c, s2c, params["g3"], params["be3"], count, w, c)
    aff4 = jnp.concatenate([aff3, affs], axis=0)       # (4, wc)

    # ---- pass 4: BN3 + BN_skip + residual add + ReLU ('parallel' axis) -------
    gs4 = pltpu.PrefetchScalarGridSpec(
        num_scalar_prefetch=0, grid=(num_tiles,),
        in_specs=[tiled_spec(wc),               # h3 pre-BN
                  tiled_spec(wc, 1),            # h0[:, wc:]  (skip lanes)
                  resident_spec((4, wc))],
        out_specs=tiled_spec(wc))
    out2d = pl.pallas_call(
        _pass4_kernel,
        out_shape=jax.ShapeDtypeStruct((rows, wc), f32),
        grid_spec=gs4,
        compiler_params=_compiler_params("parallel"),
    )(h3p, h0, aff4)

    # (N*H, W*C) -> NHWC -> NCHW
    return jnp.transpose(out2d.reshape(n, h, w, c), (0, 3, 1, 2))


# ----------------------------- pure-JAX reference ----------------------------
def residual_block_reference(x_nchw, params):
    x = jnp.transpose(x_nchw, (0, 2, 3, 1))           # NHWC

    def conv(hh, w_hwio, b, pad):
        y = lax.conv_general_dilated(
            hh, w_hwio, window_strides=(1, 1),
            padding=[(pad, pad), (pad, pad)],
            dimension_numbers=("NHWC", "HWIO", "NHWC"),
            precision=lax.Precision.HIGHEST)
        return y + b.reshape(1, 1, 1, -1)

    def bn(hh, gamma, beta):
        mean = hh.mean(axis=(0, 1, 2), keepdims=True)
        var = ((hh - mean) ** 2).mean(axis=(0, 1, 2), keepdims=True)
        return (gamma.reshape(1, 1, 1, -1) * (hh - mean) * lax.rsqrt(var + _EPS)
                + beta.reshape(1, 1, 1, -1))

    w1 = params["w1"][None, None]                     # (1,1,Cin,Cout)
    w3 = params["w3"][None, None]
    ws = params["ws"][None, None]

    hh = jnp.maximum(bn(conv(x, w1, params["b1"], 0),
                        params["g1"], params["be1"]), 0.0)
    hh = jnp.maximum(bn(conv(hh, params["w2"], params["b2"], 1),
                        params["g2"], params["be2"]), 0.0)
    hh = bn(conv(hh, w3, params["b3"], 0), params["g3"], params["be3"])
    sk = bn(conv(x, ws, params["bs"], 0), params["gs"], params["bes"])
    out = jnp.maximum(hh + sk, 0.0)
    return jnp.transpose(out, (0, 3, 1, 2))


def init_params(key, cin, cout):
    ks = jax.random.split(key, 16)

    def wgt(k, shape, scale=0.1):
        return scale * jax.random.normal(k, shape, jnp.float32)

    return {
        # conv1 (1x1, cin->cout) + BN
        "w1": wgt(ks[0], (cin, cout)), "b1": wgt(ks[1], (cout,)),
        "g1": 1.0 + wgt(ks[2], (cout,)), "be1": wgt(ks[3], (cout,)),
        # conv2 (3x3, cout->cout, HWIO) + BN
        "w2": wgt(ks[4], (3, 3, cout, cout)), "b2": wgt(ks[5], (cout,)),
        "g2": 1.0 + wgt(ks[6], (cout,)), "be2": wgt(ks[7], (cout,)),
        # conv3 (1x1, cout->cout) + BN
        "w3": wgt(ks[8], (cout, cout)), "b3": wgt(ks[9], (cout,)),
        "g3": 1.0 + wgt(ks[10], (cout,)), "be3": wgt(ks[11], (cout,)),
        # skip projection (1x1, cin->cout) + BN
        "ws": wgt(ks[12], (cin, cout)), "bs": wgt(ks[13], (cout,)),
        "gs": 1.0 + wgt(ks[14], (cout,)), "bes": wgt(ks[15], (cout,)),
    }


if __name__ == "__main__":
    N, Cin, Cout, H, W = 2, 4, 8, 16, 16
    key = jax.random.PRNGKey(0)
    kx_, kp = jax.random.split(key)
    x = jax.random.normal(kx_, (N, Cin, H, W), jnp.float32)   # NCHW like torch
    params = init_params(kp, Cin, Cout)

    # Small row tile (one 16-row image per tile) so the toy shapes exercise the
    # multi-tile grid and the cross-tile BN-stats accumulation path; production
    # sizes would use the default max_tile_rows=512 (roughly halve on v7x).
    run = jax.jit(functools.partial(residual_block_pallas, max_tile_rows=16))
    out = jax.block_until_ready(run(x, params))
    ref = jax.block_until_ready(jax.jit(residual_block_reference)(x, params))

    assert out.shape == (N, Cout, H, W), out.shape
    # Kernel uses default MXU precision (bf16 operands, f32 accumulation) and
    # bf16 intermediate storage; the reference runs at Precision.HIGHEST.
    max_err = float(jnp.max(jnp.abs(out - ref)))
    assert jnp.allclose(out, ref, atol=5e-2, rtol=5e-2), \
        f"mismatch vs reference, max abs err = {max_err}"
    print("KERNEL_OK")
</pallas_src>

<mosaic_0001>
module attributes {stable_mosaic.version = 11 : i64} {
  func.func @_pass1_kernel(%arg0: i32, %arg1: memref<16x64xbf16, #tpu.memory_space<vmem>>, %arg2: memref<64x256xbf16, #tpu.memory_space<vmem>>, %arg3: memref<16x256xbf16, #tpu.memory_space<vmem>>, %arg4: memref<1x256xf32, #tpu.memory_space<vmem>>, %arg5: memref<1x256xf32, #tpu.memory_space<vmem>>) attributes {dimension_semantics = [#tpu.dimension_semantics<arbitrary>], iteration_bounds = array<i64: 2>, scalar_prefetch = 0 : i64, scratch_operands = 0 : i64, tpu.core_type = #tpu.core_type<tc>, window_params = [{transform_indices = @transform_0, window_bounds = array<i64: 16, 64>}, {pipeline_mode = #tpu.pipeline_mode<synchronous>, transform_indices = @transform_1, window_bounds = array<i64: 64, 256>}, {transform_indices = @transform_2, window_bounds = array<i64: 16, 256>}, {pipeline_mode = #tpu.pipeline_mode<synchronous>, transform_indices = @transform_3, window_bounds = array<i64: 1, 256>}, {pipeline_mode = #tpu.pipeline_mode<synchronous>, transform_indices = @transform_4, window_bounds = array<i64: 1, 256>}]} {
    %c0_i32 = arith.constant 0 : i32
    %0 = arith.cmpi eq, %arg0, %c0_i32 : i32
    %1 = arith.extui %0 : i1 to i32
    %c0_i32_0 = arith.constant 0 : i32
    %2 = arith.cmpi ne, %1, %c0_i32_0 : i32
    scf.if %2 {
      %cst_16 = arith.constant 0.000000e+00 : f32
      %19 = vector.broadcast %cst_16 : f32 to vector<1x256xf32>
      %c0_17 = arith.constant 0 : index
      %c0_18 = arith.constant 0 : index
      %20 = vector.load %arg4[%c0_17, %c0_18] : memref<1x256xf32, #tpu.memory_space<vmem>>, vector<1x256xf32>
      tpu.vector_store %arg4[%c0_17, %c0_18], %19 {strides = array<i32>} : memref<1x256xf32, #tpu.memory_space<vmem>>, vector<1x256xf32>,
      %cst_19 = arith.constant 0.000000e+00 : f32
      %21 = vector.broadcast %cst_19 : f32 to vector<1x256xf32>
      %c0_20 = arith.constant 0 : index
      %c0_21 = arith.constant 0 : index
      %22 = vector.load %arg5[%c0_20, %c0_21] : memref<1x256xf32, #tpu.memory_space<vmem>>, vector<1x256xf32>
      tpu.vector_store %arg5[%c0_20, %c0_21], %21 {strides = array<i32>} : memref<1x256xf32, #tpu.memory_space<vmem>>, vector<1x256xf32>,
    } else {
    }
    %c0 = arith.constant 0 : index
    %c0_1 = arith.constant 0 : index
    %3 = vector.load %arg1[%c0, %c0_1] : memref<16x64xbf16, #tpu.memory_space<vmem>>, vector<16x64xbf16>
    %c0_2 = arith.constant 0 : index
    %c0_3 = arith.constant 0 : index
    %4 = vector.load %arg2[%c0_2, %c0_3] : memref<64x256xbf16, #tpu.memory_space<vmem>>, vector<64x256xbf16>
    %cst = arith.constant dense<0.000000e+00> : vector<16x256xf32>
    %5 = tpu.matmul %3, %4, %cst {dimension_numbers = #tpu.dot_dimension_numbers<[1], [0], [0], [1], [0, 0, 1, 1], [], []>} : vector<16x64xbf16>, vector<64x256xbf16>, vector<16x256xf32> -> vector<16x256xf32>
    %6 = arith.truncf %5 : vector<16x256xf32> to vector<16x256xbf16>
    %c0_4 = arith.constant 0 : index
    %c0_5 = arith.constant 0 : index
    %7 = vector.load %arg3[%c0_4, %c0_5] : memref<16x256xbf16, #tpu.memory_space<vmem>>, vector<16x256xbf16>
    tpu.vector_store %arg3[%c0_4, %c0_5], %6 {strides = array<i32>} : memref<16x256xbf16, #tpu.memory_space<vmem>>, vector<16x256xbf16>,
    %c0_6 = arith.constant 0 : index
    %c0_7 = arith.constant 0 : index
    %8 = vector.load %arg4[%c0_6, %c0_7] : memref<1x256xf32, #tpu.memory_space<vmem>>, vector<1x256xf32>
    %cst_8 = arith.constant dense<0.000000e+00> : vector<256xf32>
    %9 = vector.multi_reduction <add>, %5, %cst_8 [0] : vector<16x256xf32> to vector<256xf32>
    %10 = vector.shape_cast %9 : vector<256xf32> to vector<1x256xf32>
    %11 = arith.addf %8, %10 : vector<1x256xf32>
    %c0_9 = arith.constant 0 : index
    %c0_10 = arith.constant 0 : index
    %12 = vector.load %arg4[%c0_9, %c0_10] : memref<1x256xf32, #tpu.memory_space<vmem>>, vector<1x256xf32>
    tpu.vector_store %arg4[%c0_9, %c0_10], %11 {strides = array<i32>} : memref<1x256xf32, #tpu.memory_space<vmem>>, vector<1x256xf32>,
    %c0_11 = arith.constant 0 : index
    %c0_12 = arith.constant 0 : index
    %13 = vector.load %arg5[%c0_11, %c0_12] : memref<1x256xf32, #tpu.memory_space<vmem>>, vector<1x256xf32>
    %14 = arith.mulf %5, %5 : vector<16x256xf32>
    %cst_13 = arith.constant dense<0.000000e+00> : vector<256xf32>
    %15 = vector.multi_reduction <add>, %14, %cst_13 [0] : vector<16x256xf32> to vector<256xf32>
    %16 = vector.shape_cast %15 : vector<256xf32> to vector<1x256xf32>
    %17 = arith.addf %13, %16 : vector<1x256xf32>
    %c0_14 = arith.constant 0 : index
    %c0_15 = arith.constant 0 : index
    %18 = vector.load %arg5[%c0_14, %c0_15] : memref<1x256xf32, #tpu.memory_space<vmem>>, vector<1x256xf32>
    tpu.vector_store %arg5[%c0_14, %c0_15], %17 {strides = array<i32>} : memref<1x256xf32, #tpu.memory_space<vmem>>, vector<1x256xf32>,
    return
  }
  func.func @transform_0(%arg0: i32) -> (i32, i32) {
    %c0_i32 = arith.constant 0 : i32
    %c0_i32_0 = arith.constant 0 : i32
    return %arg0, %c0_i32 : i32, i32
  }
  func.func @transform_1(%arg0: i32) -> (i32, i32) {
    %c0_i32 = arith.constant 0 : i32
    %c0_i32_0 = arith.constant 0 : i32
    %c0_i32_1 = arith.constant 0 : i32
    return %c0_i32, %c0_i32_0 : i32, i32
  }
  func.func @transform_2(%arg0: i32) -> (i32, i32) {
    %c0_i32 = arith.constant 0 : i32
    %c0_i32_0 = arith.constant 0 : i32
    return %arg0, %c0_i32 : i32, i32
  }
  func.func @transform_3(%arg0: i32) -> (i32, i32) {
    %c0_i32 = arith.constant 0 : i32
    %c0_i32_0 = arith.constant 0 : i32
    %c0_i32_1 = arith.constant 0 : i32
    return %c0_i32, %c0_i32_0 : i32, i32
  }
  func.func @transform_4(%arg0: i32) -> (i32, i32) {
    %c0_i32 = arith.constant 0 : i32
    %c0_i32_0 = arith.constant 0 : i32
    %c0_i32_1 = arith.constant 0 : i32
    return %c0_i32, %c0_i32_0 : i32, i32
  }
}

module attributes {stable_mosaic.version = 11 : i64} {
  func.func @_pass2_kernel(%arg0: i32, %arg1: memref<16x128xbf16, #tpu.memory_space<vmem>>, %arg2: memref<2x128xf32, #tpu.memory_space<vmem>>, %arg3: memref<384x128xbf16, #tpu.memory_space<vmem>>, %arg4: memref<16x128xbf16, #tpu.memory_space<vmem>>, %arg5: memref<1x128xf32, #tpu.memory_space<vmem>>, %arg6: memref<1x128xf32, #tpu.memory_space<vmem>>) attributes {dimension_semantics = [#tpu.dimension_semantics<arbitrary>], iteration_bounds = array<i64: 2>, scalar_prefetch = 0 : i64, scratch_operands = 0 : i64, tpu.core_type = #tpu.core_type<tc>, window_params = [{transform_indices = @transform_0, window_bounds = array<i64: 16, 128>}, {pipeline_mode = #tpu.pipeline_mode<synchronous>, transform_indices = @transform_1, window_bounds = array<i64: 2, 128>}, {pipeline_mode = #tpu.pipeline_mode<synchronous>, transform_indices = @transform_2, window_bounds = array<i64: 384, 128>}, {transform_indices = @transform_3, window_bounds = array<i64: 16, 128>}, {pipeline_mode = #tpu.pipeline_mode<synchronous>, transform_indices = @transform_4, window_bounds = array<i64: 1, 128>}, {pipeline_mode = #tpu.pipeline_mode<synchronous>, transform_indices = @transform_5, window_bounds = array<i64: 1, 128>}]} {
    %c0_i32 = arith.constant 0 : i32
    %0 = arith.cmpi eq, %arg0, %c0_i32 : i32
    %1 = arith.extui %0 : i1 to i32
    %c0_i32_0 = arith.constant 0 : i32
    %2 = arith.cmpi ne, %1, %c0_i32_0 : i32
    scf.if %2 {
      %cst_28 = arith.constant 0.000000e+00 : f32
      %58 = vector.broadcast %cst_28 : f32 to vector<1x128xf32>
      %c0_29 = arith.constant 0 : index
      %c0_30 = arith.constant 0 : index
      %59 = vector.load %arg5[%c0_29, %c0_30] : memref<1x128xf32, #tpu.memory_space<vmem>>, vector<1x128xf32>
      tpu.vector_store %arg5[%c0_29, %c0_30], %58 {strides = array<i32>} : memref<1x128xf32, #tpu.memory_space<vmem>>, vector<1x128xf32>,
      %cst_31 = arith.constant 0.000000e+00 : f32
      %60 = vector.broadcast %cst_31 : f32 to vector<1x128xf32>
      %c0_32 = arith.constant 0 : index
      %c0_33 = arith.constant 0 : index
      %61 = vector.load %arg6[%c0_32, %c0_33] : memref<1x128xf32, #tpu.memory_space<vmem>>, vector<1x128xf32>
      tpu.vector_store %arg6[%c0_32, %c0_33], %60 {strides = array<i32>} : memref<1x128xf32, #tpu.memory_space<vmem>>, vector<1x128xf32>,
    } else {
    }
    %c0 = arith.constant 0 : index
    %c0_1 = arith.constant 0 : index
    %3 = vector.load %arg2[%c0, %c0_1] : memref<2x128xf32, #tpu.memory_space<vmem>>, vector<2x128xf32>
    %c0_2 = arith.constant 0 : index
    %c0_3 = arith.constant 0 : index
    %4 = vector.load %arg1[%c0_2, %c0_3] : memref<16x128xbf16, #tpu.memory_space<vmem>>, vector<16x128xbf16>
    %5 = arith.extf %4 : vector<16x128xbf16> to vector<16x128xf32>
    %6 = vector.extract_strided_slice %3 {offsets = [0, 0], sizes = [1, 128], strides = [1, 1]} : vector<2x128xf32> to vector<1x128xf32>
    %7 = vector.broadcast %6 : vector<1x128xf32> to vector<16x128xf32>
    %8 = arith.mulf %5, %7 : vector<16x128xf32>
    %9 = vector.extract_strided_slice %3 {offsets = [1, 0], sizes = [1, 128], strides = [1, 1]} : vector<2x128xf32> to vector<1x128xf32>
    %10 = vector.broadcast %9 : vector<1x128xf32> to vector<16x128xf32>
    %11 = arith.addf %8, %10 : vector<16x128xf32>
    %cst = arith.constant 0.000000e+00 : f32
    %12 = vector.broadcast %cst : f32 to vector<16x128xf32>
    %13 = arith.maximumf %11, %12 : vector<16x128xf32>
    %14 = tpu.iota {dimensions = array<i32: 0>} : vector<16x128xi32>
    %c16_i32 = arith.constant 16 : i32
    %c0_i32_4 = arith.constant 0 : i32
    %15 = arith.cmpi eq, %c16_i32, %c0_i32_4 : i32
    %c1_i32 = arith.constant 1 : i32
    %16 = arith.select %15, %c1_i32, %c16_i32 : i32
    %17 = vector.broadcast %16 : i32 to vector<16x128xi32>
    %18 = arith.remsi %14, %17 : vector<16x128xi32>
    %c0_i32_5 = arith.constant 0 : i32
    %19 = vector.broadcast %c0_i32_5 : i32 to vector<16x128xi32>
    %20 = arith.cmpi ne, %18, %19 : vector<16x128xi32>
    %c0_i32_6 = arith.constant 0 : i32
    %21 = vector.broadcast %c0_i32_6 : i32 to vector<16x128xi32>
    %22 = arith.cmpi slt, %18, %21 : vector<16x128xi32>
    %c0_i32_7 = arith.constant 0 : i32
    %23 = arith.cmpi slt, %16, %c0_i32_7 : i32
    %24 = vector.broadcast %23 : i1 to vector<16x128xi1>
    %25 = vector.broadcast %24 : vector<16x128xi1> to vector<16x128xi1>
    %26 = arith.xori %22, %25 : vector<16x128xi1>
    %27 = arith.andi %26, %20 : vector<16x128xi1>
    %28 = vector.broadcast %16 : i32 to vector<16x128xi32>
    %29 = arith.addi %18, %28 : vector<16x128xi32>
    %30 = arith.select %27, %29, %18 : vector<16x128xi1>, vector<16x128xi32>
    %c0_i32_8 = arith.constant 0 : i32
    %31 = vector.broadcast %c0_i32_8 : i32 to vector<16x128xi32>
    %32 = arith.cmpi ne, %30, %31 : vector<16x128xi32>
    %c1_i32_9 = arith.constant 1 : i32
    %33 = tpu.dynamic_rotate %13 by %c1_i32_9 dim 0 : vector<16x128xf32>, i32 -> vector<16x128xf32>
    %cst_10 = arith.constant 0.000000e+00 : f32
    %34 = vector.broadcast %cst_10 : f32 to vector<16x128xf32>
    %35 = arith.select %32, %33, %34 : vector<16x128xi1>, vector<16x128xf32>
    %c15_i32 = arith.constant 15 : i32
    %36 = vector.broadcast %c15_i32 : i32 to vector<16x128xi32>
    %37 = arith.cmpi ne, %30, %36 : vector<16x128xi32>
    %c15_i32_11 = arith.constant 15 : i32
    %38 = tpu.dynamic_rotate %13 by %c15_i32_11 dim 0 : vector<16x128xf32>, i32 -> vector<16x128xf32>
    %cst_12 = arith.constant 0.000000e+00 : f32
    %39 = vector.broadcast %cst_12 : f32 to vector<16x128xf32>
    %40 = arith.select %37, %38, %39 : vector<16x128xi1>, vector<16x128xf32>
    %41 = tpu.concatenate %35, %13, %40 in 1 : vector<16x128xf32>, vector<16x128xf32>, vector<16x128xf32> -> vector<16x384xf32>
    %42 = arith.truncf %41 : vector<16x384xf32> to vector<16x384xbf16>
    %c0_13 = arith.constant 0 : index
    %c0_14 = arith.constant 0 : index
    %43 = vector.load %arg3[%c0_13, %c0_14] : memref<384x128xbf16, #tpu.memory_space<vmem>>, vector<384x128xbf16>
    %cst_15 = arith.constant dense<0.000000e+00> : vector<16x128xf32>
    %44 = tpu.matmul %42, %43, %cst_15 {dimension_numbers = #tpu.dot_dimension_numbers<[1], [0], [0], [1], [0, 0, 1, 1], [], []>} : vector<16x384xbf16>, vector<384x128xbf16>, vector<16x128xf32> -> vector<16x128xf32>
    %45 = arith.truncf %44 : vector<16x128xf32> to vector<16x128xbf16>
    %c0_16 = arith.constant 0 : index
    %c0_17 = arith.constant 0 : index
    %46 = vector.load %arg4[%c0_16, %c0_17] : memref<16x128xbf16, #tpu.memory_space<vmem>>, vector<16x128xbf16>
    tpu.vector_store %arg4[%c0_16, %c0_17], %45 {strides = array<i32>} : memref<16x128xbf16, #tpu.memory_space<vmem>>, vector<16x128xbf16>,
    %c0_18 = arith.constant 0 : index
    %c0_19 = arith.constant 0 : index
    %47 = vector.load %arg5[%c0_18, %c0_19] : memref<1x128xf32, #tpu.memory_space<vmem>>, vector<1x128xf32>
    %cst_20 = arith.constant dense<0.000000e+00> : vector<128xf32>
    %48 = vector.multi_reduction <add>, %44, %cst_20 [0] : vector<16x128xf32> to vector<128xf32>
    %49 = vector.shape_cast %48 : vector<128xf32> to vector<1x128xf32>
    %50 = arith.addf %47, %49 : vector<1x128xf32>
    %c0_21 = arith.constant 0 : index
    %c0_22 = arith.constant 0 : index
    %51 = vector.load %arg5[%c0_21, %c0_22] : memref<1x128xf32, #tpu.memory_space<vmem>>, vector<1x128xf32>
    tpu.vector_store %arg5[%c0_21, %c0_22], %50 {strides = array<i32>} : memref<1x128xf32, #tpu.memory_space<vmem>>, vector<1x128xf32>,
    %c0_23 = arith.constant 0 : index
    %c0_24 = arith.constant 0 : index
    %52 = vector.load %arg6[%c0_23, %c0_24] : memref<1x128xf32, #tpu.memory_space<vmem>>, vector<1x128xf32>
    %53 = arith.mulf %44, %44 : vector<16x128xf32>
    %cst_25 = arith.constant dense<0.000000e+00> : vector<128xf32>
    %54 = vector.multi_reduction <add>, %53, %cst_25 [0] : vector<16x128xf32> to vector<128xf32>
    %55 = vector.shape_cast %54 : vector<128xf32> to vector<1x128xf32>
    %56 = arith.addf %52, %55 : vector<1x128xf32>
    %c0_26 = arith.constant 0 : index
    %c0_27 = arith.constant 0 : index
    %57 = vector.load %arg6[%c0_26, %c0_27] : memref<1x128xf32, #tpu.memory_space<vmem>>, vector<1x128xf32>
    tpu.vector_store %arg6[%c0_26, %c0_27], %56 {strides = array<i32>} : memref<1x128xf32, #tpu.memory_space<vmem>>, vector<1x128xf32>,
    return
  }
  func.func @transform_0(%arg0: i32) -> (i32, i32) {
    %c0_i32 = arith.constant 0 : i32
    %c0_i32_0 = arith.constant 0 : i32
    return %arg0, %c0_i32 : i32, i32
  }
  func.func @transform_1(%arg0: i32) -> (i32, i32) {
    %c0_i32 = arith.constant 0 : i32
    %c0_i32_0 = arith.constant 0 : i32
    %c0_i32_1 = arith.constant 0 : i32
    return %c0_i32, %c0_i32_0 : i32, i32
  }
  func.func @transform_2(%arg0: i32) -> (i32, i32) {
    %c0_i32 = arith.constant 0 : i32
    %c0_i32_0 = arith.constant 0 : i32
    %c0_i32_1 = arith.constant 0 : i32
    return %c0_i32, %c0_i32_0 : i32, i32
  }
  func.func @transform_3(%arg0: i32) -> (i32, i32) {
    %c0_i32 = arith.constant 0 : i32
    %c0_i32_0 = arith.constant 0 : i32
    return %arg0, %c0_i32 : i32, i32
  }
  func.func @transform_4(%arg0: i32) -> (i32, i32) {
    %c0_i32 = arith.constant 0 : i32
    %c0_i32_0 = arith.constant 0 : i32
    %c0_i32_1 = arith.constant 0 : i32
    return %c0_i32, %c0_i32_0 : i32, i32
  }
  func.func @transform_5(%arg0: i32) -> (i32, i32) {
    %c0_i32 = arith.constant 0 : i32
    %c0_i32_0 = arith.constant 0 : i32
    %c0_i32_1 = arith.constant 0 : i32
    return %c0_i32, %c0_i32_0 : i32, i32
  }
}

module attributes {stable_mosaic.version = 11 : i64} {
  func.func @_pass3_kernel(%arg0: i32, %arg1: memref<16x128xbf16, #tpu.memory_space<vmem>>, %arg2: memref<2x128xf32, #tpu.memory_space<vmem>>, %arg3: memref<128x128xbf16, #tpu.memory_space<vmem>>, %arg4: memref<16x128xbf16, #tpu.memory_space<vmem>>, %arg5: memref<1x128xf32, #tpu.memory_space<vmem>>, %arg6: memref<1x128xf32, #tpu.memory_space<vmem>>) attributes {dimension_semantics = [#tpu.dimension_semantics<arbitrary>], iteration_bounds = array<i64: 2>, scalar_prefetch = 0 : i64, scratch_operands = 0 : i64, tpu.core_type = #tpu.core_type<tc>, window_params = [{transform_indices = @transform_0, window_bounds = array<i64: 16, 128>}, {pipeline_mode = #tpu.pipeline_mode<synchronous>, transform_indices = @transform_1, window_bounds = array<i64: 2, 128>}, {pipeline_mode = #tpu.pipeline_mode<synchronous>, transform_indices = @transform_2, window_bounds = array<i64: 128, 128>}, {transform_indices = @transform_3, window_bounds = array<i64: 16, 128>}, {pipeline_mode = #tpu.pipeline_mode<synchronous>, transform_indices = @transform_4, window_bounds = array<i64: 1, 128>}, {pipeline_mode = #tpu.pipeline_mode<synchronous>, transform_indices = @transform_5, window_bounds = array<i64: 1, 128>}]} {
    %c0_i32 = arith.constant 0 : i32
    %0 = arith.cmpi eq, %arg0, %c0_i32 : i32
    %1 = arith.extui %0 : i1 to i32
    %c0_i32_0 = arith.constant 0 : i32
    %2 = arith.cmpi ne, %1, %c0_i32_0 : i32
    scf.if %2 {
      %cst_19 = arith.constant 0.000000e+00 : f32
      %30 = vector.broadcast %cst_19 : f32 to vector<1x128xf32>
      %c0_20 = arith.constant 0 : index
      %c0_21 = arith.constant 0 : index
      %31 = vector.load %arg5[%c0_20, %c0_21] : memref<1x128xf32, #tpu.memory_space<vmem>>, vector<1x128xf32>
      tpu.vector_store %arg5[%c0_20, %c0_21], %30 {strides = array<i32>} : memref<1x128xf32, #tpu.memory_space<vmem>>, vector<1x128xf32>,
      %cst_22 = arith.constant 0.000000e+00 : f32
      %32 = vector.broadcast %cst_22 : f32 to vector<1x128xf32>
      %c0_23 = arith.constant 0 : index
      %c0_24 = arith.constant 0 : index
      %33 = vector.load %arg6[%c0_23, %c0_24] : memref<1x128xf32, #tpu.memory_space<vmem>>, vector<1x128xf32>
      tpu.vector_store %arg6[%c0_23, %c0_24], %32 {strides = array<i32>} : memref<1x128xf32, #tpu.memory_space<vmem>>, vector<1x128xf32>,
    } else {
    }
    %c0 = arith.constant 0 : index
    %c0_1 = arith.constant 0 : index
    %3 = vector.load %arg2[%c0, %c0_1] : memref<2x128xf32, #tpu.memory_space<vmem>>, vector<2x128xf32>
    %c0_2 = arith.constant 0 : index
    %c0_3 = arith.constant 0 : index
    %4 = vector.load %arg1[%c0_2, %c0_3] : memref<16x128xbf16, #tpu.memory_space<vmem>>, vector<16x128xbf16>
    %5 = arith.extf %4 : vector<16x128xbf16> to vector<16x128xf32>
    %6 = vector.extract_strided_slice %3 {offsets = [0, 0], sizes = [1, 128], strides = [1, 1]} : vector<2x128xf32> to vector<1x128xf32>
    %7 = vector.broadcast %6 : vector<1x128xf32> to vector<16x128xf32>
    %8 = arith.mulf %5, %7 : vector<16x128xf32>
    %9 = vector.extract_strided_slice %3 {offsets = [1, 0], sizes = [1, 128], strides = [1, 1]} : vector<2x128xf32> to vector<1x128xf32>
    %10 = vector.broadcast %9 : vector<1x128xf32> to vector<16x128xf32>
    %11 = arith.addf %8, %10 : vector<16x128xf32>
    %cst = arith.constant 0.000000e+00 : f32
    %12 = vector.broadcast %cst : f32 to vector<16x128xf32>
    %13 = arith.maximumf %11, %12 : vector<16x128xf32>
    %14 = arith.truncf %13 : vector<16x128xf32> to vector<16x128xbf16>
    %c0_4 = arith.constant 0 : index
    %c0_5 = arith.constant 0 : index
    %15 = vector.load %arg3[%c0_4, %c0_5] : memref<128x128xbf16, #tpu.memory_space<vmem>>, vector<128x128xbf16>
    %cst_6 = arith.constant dense<0.000000e+00> : vector<16x128xf32>
    %16 = tpu.matmul %14, %15, %cst_6 {dimension_numbers = #tpu.dot_dimension_numbers<[1], [0], [0], [1], [0, 0, 1, 1], [], []>} : vector<16x128xbf16>, vector<128x128xbf16>, vector<16x128xf32> -> vector<16x128xf32>
    %17 = arith.truncf %16 : vector<16x128xf32> to vector<16x128xbf16>
    %c0_7 = arith.constant 0 : index
    %c0_8 = arith.constant 0 : index
    %18 = vector.load %arg4[%c0_7, %c0_8] : memref<16x128xbf16, #tpu.memory_space<vmem>>, vector<16x128xbf16>
    tpu.vector_store %arg4[%c0_7, %c0_8], %17 {strides = array<i32>} : memref<16x128xbf16, #tpu.memory_space<vmem>>, vector<16x128xbf16>,
    %c0_9 = arith.constant 0 : index
    %c0_10 = arith.constant 0 : index
    %19 = vector.load %arg5[%c0_9, %c0_10] : memref<1x128xf32, #tpu.memory_space<vmem>>, vector<1x128xf32>
    %cst_11 = arith.constant dense<0.000000e+00> : vector<128xf32>
    %20 = vector.multi_reduction <add>, %16, %cst_11 [0] : vector<16x128xf32> to vector<128xf32>
    %21 = vector.shape_cast %20 : vector<128xf32> to vector<1x128xf32>
    %22 = arith.addf %19, %21 : vector<1x128xf32>
    %c0_12 = arith.constant 0 : index
    %c0_13 = arith.constant 0 : index
    %23 = vector.load %arg5[%c0_12, %c0_13] : memref<1x128xf32, #tpu.memory_space<vmem>>, vector<1x128xf32>
    tpu.vector_store %arg5[%c0_12, %c0_13], %22 {strides = array<i32>} : memref<1x128xf32, #tpu.memory_space<vmem>>, vector<1x128xf32>,
    %c0_14 = arith.constant 0 : index
    %c0_15 = arith.constant 0 : index
    %24 = vector.load %arg6[%c0_14, %c0_15] : memref<1x128xf32, #tpu.memory_space<vmem>>, vector<1x128xf32>
    %25 = arith.mulf %16, %16 : vector<16x128xf32>
    %cst_16 = arith.constant dense<0.000000e+00> : vector<128xf32>
    %26 = vector.multi_reduction <add>, %25, %cst_16 [0] : vector<16x128xf32> to vector<128xf32>
    %27 = vector.shape_cast %26 : vector<128xf32> to vector<1x128xf32>
    %28 = arith.addf %24, %27 : vector<1x128xf32>
    %c0_17 = arith.constant 0 : index
    %c0_18 = arith.constant 0 : index
    %29 = vector.load %arg6[%c0_17, %c0_18] : memref<1x128xf32, #tpu.memory_space<vmem>>, vector<1x128xf32>
    tpu.vector_store %arg6[%c0_17, %c0_18], %28 {strides = array<i32>} : memref<1x128xf32, #tpu.memory_space<vmem>>, vector<1x128xf32>,
    return
  }
  func.func @transform_0(%arg0: i32) -> (i32, i32) {
    %c0_i32 = arith.constant 0 : i32
    %c0_i32_0 = arith.constant 0 : i32
    return %arg0, %c0_i32 : i32, i32
  }
  func.func @transform_1(%arg0: i32) -> (i32, i32) {
    %c0_i32 = arith.constant 0 : i32
    %c0_i32_0 = arith.constant 0 : i32
    %c0_i32_1 = arith.constant 0 : i32
    return %c0_i32, %c0_i32_0 : i32, i32
  }
  func.func @transform_2(%arg0: i32) -> (i32, i32) {
    %c0_i32 = arith.constant 0 : i32
    %c0_i32_0 = arith.constant 0 : i32
    %c0_i32_1 = arith.constant 0 : i32
    return %c0_i32, %c0_i32_0 : i32, i32
  }
  func.func @transform_3(%arg0: i32) -> (i32, i32) {
    %c0_i32 = arith.constant 0 : i32
    %c0_i32_0 = arith.constant 0 : i32
    return %arg0, %c0_i32 : i32, i32
  }
  func.func @transform_4(%arg0: i32) -> (i32, i32) {
    %c0_i32 = arith.constant 0 : i32
    %c0_i32_0 = arith.constant 0 : i32
    %c0_i32_1 = arith.constant 0 : i32
    return %c0_i32, %c0_i32_0 : i32, i32
  }
  func.func @transform_5(%arg0: i32) -> (i32, i32) {
    %c0_i32 = arith.constant 0 : i32
    %c0_i32_0 = arith.constant 0 : i32
    %c0_i32_1 = arith.constant 0 : i32
    return %c0_i32, %c0_i32_0 : i32, i32
  }
}

module attributes {stable_mosaic.version = 11 : i64} {
  func.func @_pass4_kernel(%arg0: i32, %arg1: memref<16x128xbf16, #tpu.memory_space<vmem>>, %arg2: memref<16x128xbf16, #tpu.memory_space<vmem>>, %arg3: memref<4x128xf32, #tpu.memory_space<vmem>>, %arg4: memref<16x128xf32, #tpu.memory_space<vmem>>) attributes {dimension_semantics = [#tpu.dimension_semantics<parallel>], iteration_bounds = array<i64: 2>, scalar_prefetch = 0 : i64, scratch_operands = 0 : i64, tpu.core_type = #tpu.core_type<tc>, window_params = [{transform_indices = @transform_0, window_bounds = array<i64: 16, 128>}, {transform_indices = @transform_1, window_bounds = array<i64: 16, 128>}, {pipeline_mode = #tpu.pipeline_mode<synchronous>, transform_indices = @transform_2, window_bounds = array<i64: 4, 128>}, {transform_indices = @transform_3, window_bounds = array<i64: 16, 128>}]} {
    %c0 = arith.constant 0 : index
    %c0_0 = arith.constant 0 : index
    %0 = vector.load %arg3[%c0, %c0_0] : memref<4x128xf32, #tpu.memory_space<vmem>>, vector<4x128xf32>
    %c0_1 = arith.constant 0 : index
    %c0_2 = arith.constant 0 : index
    %1 = vector.load %arg1[%c0_1, %c0_2] : memref<16x128xbf16, #tpu.memory_space<vmem>>, vector<16x128xbf16>
    %2 = arith.extf %1 : vector<16x128xbf16> to vector<16x128xf32>
    %3 = vector.extract_strided_slice %0 {offsets = [0, 0], sizes = [1, 128], strides = [1, 1]} : vector<4x128xf32> to vector<1x128xf32>
    %4 = vector.broadcast %3 : vector<1x128xf32> to vector<16x128xf32>
    %5 = arith.mulf %2, %4 : vector<16x128xf32>
    %6 = vector.extract_strided_slice %0 {offsets = [1, 0], sizes = [1, 128], strides = [1, 1]} : vector<4x128xf32> to vector<1x128xf32>
    %7 = vector.broadcast %6 : vector<1x128xf32> to vector<16x128xf32>
    %8 = arith.addf %5, %7 : vector<16x128xf32>
    %c0_3 = arith.constant 0 : index
    %c0_4 = arith.constant 0 : index
    %9 = vector.load %arg2[%c0_3, %c0_4] : memref<16x128xbf16, #tpu.memory_space<vmem>>, vector<16x128xbf16>
    %10 = arith.extf %9 : vector<16x128xbf16> to vector<16x128xf32>
    %11 = vector.extract_strided_slice %0 {offsets = [2, 0], sizes = [1, 128], strides = [1, 1]} : vector<4x128xf32> to vector<1x128xf32>
    %12 = vector.broadcast %11 : vector<1x128xf32> to vector<16x128xf32>
    %13 = arith.mulf %10, %12 : vector<16x128xf32>
    %14 = vector.extract_strided_slice %0 {offsets = [3, 0], sizes = [1, 128], strides = [1, 1]} : vector<4x128xf32> to vector<1x128xf32>
    %15 = vector.broadcast %14 : vector<1x128xf32> to vector<16x128xf32>
    %16 = arith.addf %13, %15 : vector<16x128xf32>
    %17 = arith.addf %8, %16 : vector<16x128xf32>
    %cst = arith.constant 0.000000e+00 : f32
    %18 = vector.broadcast %cst : f32 to vector<16x128xf32>
    %19 = arith.maximumf %17, %18 : vector<16x128xf32>
    %c0_5 = arith.constant 0 : index
    %c0_6 = arith.constant 0 : index
    %20 = vector.load %arg4[%c0_5, %c0_6] : memref<16x128xf32, #tpu.memory_space<vmem>>, vector<16x128xf32>
    tpu.vector_store %arg4[%c0_5, %c0_6], %19 {strides = array<i32>} : memref<16x128xf32, #tpu.memory_space<vmem>>, vector<16x128xf32>,
    return
  }
  func.func @transform_0(%arg0: i32) -> (i32, i32) {
    %c0_i32 = arith.constant 0 : i32
    %c0_i32_0 = arith.constant 0 : i32
    return %arg0, %c0_i32 : i32, i32
  }
  func.func @transform_1(%arg0: i32) -> (i32, i32) {
    %c1_i32 = arith.constant 1 : i32
    %c0_i32 = arith.constant 0 : i32
    return %arg0, %c1_i32 : i32, i32
  }
  func.func @transform_2(%arg0: i32) -> (i32, i32) {
    %c0_i32 = arith.constant 0 : i32
    %c0_i32_0 = arith.constant 0 : i32
    %c0_i32_1 = arith.constant 0 : i32
    return %c0_i32, %c0_i32_0 : i32, i32
  }
  func.func @transform_3(%arg0: i32) -> (i32, i32) {
    %c0_i32 = arith.constant 0 : i32
    %c0_i32_0 = arith.constant 0 : i32
    return %arg0, %c0_i32 : i32, i32
  }
}

</mosaic_0001>

<llo_original>
// kernel: residual_block_pallas.4
$region0: #{residual_block_pallas.4}
  #allocation0 [shape = 'u32[]', space=smem, size = 0x4, offset = 0x4, fixed_abs, tag = 'smem constant byte address 0x4 - core index']
  #allocation1 [shape = 'u32[72,128]{1,0:T(1,128)}', space=vmem, size = 0x9000, scoped, tag = 'internal scratch']
  %s0 = inlined_call_operand.vmem [shape: bf16[32,64], index: 0, kind: input, shape index: {}]
  %s1 = inlined_call_operand.vmem [shape: bf16[64,256], index: 1, kind: input, shape index: {}]
  %s2 = inlined_call_operand.vmem [shape: bf16[32,256], index: 2, kind: output, shape index: {0}]
  %s3 = inlined_call_operand.vmem [shape: f32[1,256], index: 3, kind: output, shape index: {1}]
  %s4 = inlined_call_operand.vmem [shape: f32[1,256], index: 4, kind: output, shape index: {2}]
  %5 = xla_tuple %s2, %s3, %s4
  %s6 = sld [smem:[#allocation0]]
  $region61: #{residual_block_pallas.4} parent=0
    _
  %s8 = ssub.s32 1, %s6
  %s9 = scalar_select 0, %s8, %s6
  loop: start=0, step=1, limit=4
  $region2: #{residual_block_pallas.4} parent=0 // loop_pre_header
    _
  $region3: #{residual_block_pallas.4} parent=0 // loop_header
    %s11 = sphi 0, %s15
    %p12 = scmp.ge.s32.totalorder %s11, 4
    %s21 = sphi 0, %s23
    %s24 = sphi 0, %s21
    %s25 = sphi 0, %s24
    %s41 = sphi 0, %s25
    %s45 = sphi 0, %s45
    %s47 = sphi 0, %s45
    %s48 = sphi 0, %s47
    %s62 = sphi 0, %s48
    %s68 = sphi 0, %s70
    %s71 = sphi 0, %s68
    %s72 = sphi 0, %s71
    %s88 = sphi 0, %s72
    %s92 = sphi 0, %s92
    %s94 = sphi 0, %s92
    %s95 = sphi 0, %s94
    %s109 = sphi 0, %s95
    %s113 = sphi 0, %s113
    %s115 = sphi 0, %s113
    %s116 = sphi 0, %s115
    %s130 = sphi 0, %s116
  $region4: #{residual_block_pallas.4} parent=0 // loop_header_branch
    %14 = sbr.rel (%p12) target = $region8
  $region5: #{residual_block_pallas.4} parent=0 // loop_body
    %s16 = ssub.s32 %s11, 1
    %s17 = ssub.s32 %s11, 2
    %s18 = sadd.s32 %s11, 1
    %s19 = ssub.s32 %s11, %s18
    %p20 = scmp.eq.s32.totalorder %s19, 0
    %s22 = sadd.s32 %s21, 1
    %s23 = scalar_select %p20, %s21, %s22
    %p26 = pneg %p20
    %p27 = scmp.eq.s32.totalorder %s11, 1
    %p28 = por %p26, %p27
    %p29 = scmp.ne.s32.totalorder %s21, %s24
    %p30 = scmp.eq.s32.totalorder %s11, 0
    %p31 = por %p29, %p30
    %p32 = scmp.ne.s32.totalorder %s21, %s24
    %p33 = scmp.eq.s32.totalorder %s16, 1
    %p34 = por %p32, %p33
    %p35 = scmp.ne.s32.totalorder %s24, %s25
    %p36 = scmp.eq.s32.totalorder %s16, 0
    %p37 = por %p35, %p36
    %p38 = scmp.ne.s32.totalorder %s24, %s25
    %p39 = scmp.eq.s32.totalorder %s17, 1
    %p40 = por %p38, %p39
    %p42 = scmp.ne.s32.totalorder %s25, %s41
    %p43 = scmp.eq.s32.totalorder %s17, 0
    %p44 = por %p42, %p43
    %s46 = sadd.s32 %s45, 1
    %p49 = scmp.eq.s32.totalorder %s11, 1
    %p50 = scmp.ne.s32.totalorder %s45, %s47
    %p51 = scmp.eq.s32.totalorder %s11, 0
    %p52 = por %p50, %p51
    %p53 = scmp.ne.s32.totalorder %s45, %s47
    %p54 = scmp.eq.s32.totalorder %s16, 1
    %p55 = por %p53, %p54
    %p56 = scmp.ne.s32.totalorder %s47, %s48
    %p57 = scmp.eq.s32.totalorder %s16, 0
    %p58 = por %p56, %p57
    %p59 = scmp.ne.s32.totalorder %s47, %s48
    %p60 = scmp.eq.s32.totalorder %s17, 1
    %p61 = por %p59, %p60
    %p63 = scmp.ne.s32.totalorder %s48, %s62
    %p64 = scmp.eq.s32.totalorder %s17, 0
    %p65 = por %p63, %p64
    %s66 = ssub.s32 %s11, %s18
    %p67 = scmp.eq.s32.totalorder %s66, 0
    %s69 = sadd.s32 %s68, 1
    %s70 = scalar_select %p67, %s68, %s69
    %p73 = pneg %p67
    %p74 = scmp.eq.s32.totalorder %s11, 1
    %p75 = por %p73, %p74
    %p76 = scmp.ne.s32.totalorder %s68, %s71
    %p77 = scmp.eq.s32.totalorder %s11, 0
    %p78 = por %p76, %p77
    %p79 = scmp.ne.s32.totalorder %s68, %s71
    %p80 = scmp.eq.s32.totalorder %s16, 1
    %p81 = por %p79, %p80
    %p82 = scmp.ne.s32.totalorder %s71, %s72
    %p83 = scmp.eq.s32.totalorder %s16, 0
    %p84 = por %p82, %p83
    %p85 = scmp.ne.s32.totalorder %s71, %s72
    %p86 = scmp.eq.s32.totalorder %s17, 1
    %p87 = por %p85, %p86
    %p89 = scmp.ne.s32.totalorder %s72, %s88
    %p90 = scmp.eq.s32.totalorder %s17, 0
    %p91 = por %p89, %p90
    %s93 = sadd.s32 %s92, 1
    %p96 = scmp.eq.s32.totalorder %s11, 1
    %p97 = scmp.ne.s32.totalorder %s92, %s94
    %p98 = scmp.eq.s32.totalorder %s11, 0
    %p99 = por %p97, %p98
    %p100 = scmp.ne.s32.totalorder %s92, %s94
    %p101 = scmp.eq.s32.totalorder %s16, 1
    %p102 = por %p100, %p101
    %p103 = scmp.ne.s32.totalorder %s94, %s95
    %p104 = scmp.eq.s32.totalorder %s16, 0
    %p105 = por %p103, %p104
    %p106 = scmp.ne.s32.totalorder %s94, %s95
    %p107 = scmp.eq.s32.totalorder %s17, 1
    %p108 = por %p106, %p107
    %p110 = scmp.ne.s32.totalorder %s95, %s109
    %p111 = scmp.eq.s32.totalorder %s17, 0
    %p112 = por %p110, %p111
    %s114 = sadd.s32 %s113, 1
    %p117 = scmp.eq.s32.totalorder %s11, 1
    %p118 = scmp.ne.s32.totalorder %s113, %s115
    %p119 = scmp.eq.s32.totalorder %s11, 0
    %p120 = por %p118, %p119
    %p121 = scmp.ne.s32.totalorder %s113, %s115
    %p122 = scmp.eq.s32.totalorder %s16, 1
    %p123 = por %p121, %p122
    %p124 = scmp.ne.s32.totalorder %s115, %s116
    %p125 = scmp.eq.s32.totalorder %s16, 0
    %p126 = por %p124, %p125
    %p127 = scmp.ne.s32.totalorder %s115, %s116
    %p128 = scmp.eq.s32.totalorder %s17, 1
    %p129 = por %p127, %p128
    %p131 = scmp.ne.s32.totalorder %s116, %s130
    %p132 = scmp.eq.s32.totalorder %s17, 0
    %p133 = por %p131, %p132
    %p134 = scmp.le.s32.totalorder 1, %s11
    %p135 = scmp.lt.s32.totalorder %s11, 3
    %p136 = pnand %p134, %p135
    %p137 = pneg %p136
    // Predicated region
    $region9: #{residual_block_pallas.4} parent=5 // pred_check
      _
    $region10: #{residual_block_pallas.4} parent=5 // pred_check_branch
      %139 = sbr.rel (%p136) target = $region12
    $region11: #{residual_block_pallas.4} parent=5 // pred_region
      %s140 = ssub.s32 %s11, 1
      // Predicated region
      $region13: #{residual_block_pallas.4} parent=11 // pred_check
        %p141 = pneg %p58
      $region14: #{residual_block_pallas.4} parent=11 // pred_check_branch
        %143 = sbr.rel (%p141) target = $region16
      $region15: #{residual_block_pallas.4} parent=11 // pred_region
        _
      $region16: #{residual_block_pallas.4} parent=11 // pred_fallthru
        _
    $region12: #{residual_block_pallas.4} parent=5 // pred_fallthru
      _
    %p144 = scmp.lt.s32.totalorder %s11, 2
    // Predicated region
    $region17: #{residual_block_pallas.4} parent=5 // pred_check
      %p145 = pneg %p144
    $region18: #{residual_block_pallas.4} parent=5 // pred_check_branch
      %147 = sbr.rel (%p145) target = $region20
    $region19: #{residual_block_pallas.4} parent=5 // pred_region
      // Predicated region
      $region21: #{residual_block_pallas.4} parent=19 // pred_check
        %p148 = pneg %p31
      $region22: #{residual_block_pallas.4} parent=19 // pred_check_branch
        %150 = sbr.rel (%p148) target = $region24
      $region23: #{residual_block_pallas.4} parent=19 // pred_region
        %s151 = smul.u32 2, %s11
        %p152 = scmp.lt.s32.totalorder %s151, 3
        %s153 = scalar_select %p152, %s151, 3
        %s154 = smul.addr %s153, 4
        %s155 = scalar_lea.vmem %s0, %s154
        %s156 = smul.u32 2, %s11
      $region24: #{residual_block_pallas.4} parent=19 // pred_fallthru
        _
    $region20: #{residual_block_pallas.4} parent=5 // pred_fallthru
      _
    %p157 = scmp.le.s32.totalorder 1, %s11
    %p158 = scmp.lt.s32.totalorder %s11, 3
    %p159 = pnand %p157, %p158
    %p160 = pneg %p159
    // Predicated region
    $region25: #{residual_block_pallas.4} parent=5 // pred_check
      _
    $region26: #{residual_block_pallas.4} parent=5 // pred_check_branch
      %162 = sbr.rel (%p159) target = $region28
    $region27: #{residual_block_pallas.4} parent=5 // pred_region
      %s163 = ssub.s32 %s11, 1
      %s164 = smul.u32 2, %s16
      %p165 = scmp.lt.s32.totalorder %s164, 3
      %s166 = scalar_select %p165, %s164, 3
      %s167 = smul.addr %s166, 4
      %s168 = scalar_lea.vmem %s0, %s167
      %p169 = pneg %p37
      %p170 = pneg %p34
      %p171 = pneg %p58
      %p172 = pneg %p55
      %p173 = pneg %p84
      %p174 = pneg %p81
      %s175 = smul.u32 2, %s16
      %p176 = scmp.lt.s32.totalorder %s175, 3
      %s177 = scalar_select %p176, %s175, 3
      %s178 = smul.addr %s177, 2
      %s179 = smul.addr %s178, 4
      %s180 = scalar_lea.vmem %s2, %s179
      %p181 = pneg %p105
      %p182 = pneg %p102
      %p183 = pneg %p126
      %p184 = pneg %p123
      %s185 = smul.u32 2, %s16
      %p186 = scmp.lt.s32.totalorder %s185, 3
      %s187 = scalar_select %p186, %s185, 3
      %s188 = smul.addr %s187, 4
      %s189 = scalar_lea.vmem %s0, %s188
      %s190 = smul.u32 2, %s16
      %s191 = smul.u32 2, %s16
      %p192 = scmp.lt.s32.totalorder %s191, 3
      %s193 = scalar_select %p192, %s191, 3
      %s194 = smul.addr %s193, 2
      %s195 = smul.addr %s194, 4
      %s196 = scalar_lea.vmem %s2, %s195
      %s197 = smul.u32 2, %s16
      %p199 = scmp.eq.s32.totalorder %s16, 0
      // Predicated region
      $region29: #{residual_block_pallas.4} parent=27 // pred_check
        %p200 = pneg %p199
      $region30: #{residual_block_pallas.4} parent=27 // pred_check_branch
        %202 = sbr.rel (%p200) target = $region32
      $region31: #{residual_block_pallas.4} parent=27 // pred_region
        %v203 = vlaneseq
        %vm204 = vcmp.ge.s32.totalorder %v203, 0
        %vm205 = vcmp.lt.s32.totalorder %v203, 256
        %vm206 = vmand %vm204, %vm205
        %207 = vst.msk [vmem:[%s3] sm:$0x3] %vm206, 0.0
        %208 = vst.msk [vmem:[%s4] sm:$0x3] %vm206, 0.0
      $region32: #{residual_block_pallas.4} parent=27 // pred_fallthru
        _
      %v209 = vld [vmem:[%s189] sm:$0xf]
      %v210 = vld [vmem:[%s189 + $0x4] sm:$0xf]
      %v211 = vld [vmem:[%s1] sm:$0xff]
      %v212 = vld [vmem:[%s1 + $0x8] sm:$0xff]
      %v213 = vld [vmem:[%s1 + $0x10] sm:$0xff]
      %v214 = vld [vmem:[%s1 + $0x18] sm:$0xff]
      %v215 = vld [vmem:[%s1 + $0x20] sm:$0xff]
      %v216 = vld [vmem:[%s1 + $0x28] sm:$0xff]
      %v217 = vld [vmem:[%s1 + $0x30] sm:$0xff]
      %v218 = vld [vmem:[%s1 + $0x38] sm:$0xff]
      %v221 = vunpack.c.l.b16 %v209
      %v222 = vunpack.c.l.b16 %v210
      %v223 = vpack.c.b16 %v222, %v221
      %v232 = vunpack.c.l.b16 %v211
      %v233 = vunpack.c.h.b16 %v211
      %v234 = vunpack.c.l.b16 %v212
      %v235 = vunpack.c.h.b16 %v212
      %v236 = vunpack.c.l.b16 %v213
      %v237 = vunpack.c.h.b16 %v213
      %v238 = vunpack.c.l.b16 %v214
      %v239 = vunpack.c.h.b16 %v214
      %v240 = vunpack.c.l.b16 %v215
      %v241 = vunpack.c.h.b16 %v215
      %v242 = vunpack.c.l.b16 %v216
      %v243 = vunpack.c.h.b16 %v216
      %v244 = vunpack.c.l.b16 %v217
      %v245 = vunpack.c.h.b16 %v217
      %v246 = vunpack.c.l.b16 %v218
      %v247 = vunpack.c.h.b16 %v218
      %v248 = vpack.c.b16 %v234, %v232
      %v249 = vpack.c.b16 %v235, %v233
      %v250 = vpack.c.b16 %v238, %v236
      %v251 = vpack.c.b16 %v239, %v237
      %v252 = vpack.c.b16 %v242, %v240
      %v253 = vpack.c.b16 %v243, %v241
      %v254 = vpack.c.b16 %v246, %v244
      %v255 = vpack.c.b16 %v247, %v245
      %vm264 = vcmask 523264
      %v266 = vsel %vm264, %v223, 0
      %268 = vmatpush.bf16.msra.mxu0 0
      %269 = vmatpush.bf16.msra.mxu0 0
      %270 = vmatpush.bf16.msra.mxu0 0
      %271 = vmatpush.bf16.msra.mxu0 0
      %272 = vmatpush.bf16.msra.mxu0 %v254
      %273 = vmatpush.bf16.msra.mxu0 %v252
      %274 = vmatpush.bf16.msra.mxu0 %v250
      %275 = vmatpush.bf16.msra.mxu0 %v248
      %276 = vmatmul.bf16.gmra.mxu0 %v266
      %v277 = vpop.f32.mrf.mxu0
      %v278 = vadd.f32 0.0, %v277
      %v279 = vpop.f32.mrf.mxu0
      %v280 = vadd.f32 0.0, %v279
      %281 = vdwg.mxu0
      %282 = vmatpush.bf16.msra.mxu0 0
      %283 = vmatpush.bf16.msra.mxu0 0
      %284 = vmatpush.bf16.msra.mxu0 0
      %285 = vmatpush.bf16.msra.mxu0 0
      %286 = vmatpush.bf16.msra.mxu0 %v255
      %287 = vmatpush.bf16.msra.mxu0 %v253
      %288 = vmatpush.bf16.msra.mxu0 %v251
      %289 = vmatpush.bf16.msra.mxu0 %v249
      %290 = vmatmul.bf16.gmra.mxu0 %v266
      %v291 = vpop.f32.mrf.mxu0
      %v292 = vadd.f32 0.0, %v291
      %v293 = vpop.f32.mrf.mxu0
      %v294 = vadd.f32 0.0, %v293
      %295 = vdwg.mxu0
      %v296 = vpack.c.bf16 %v292, %v278
      %v297 = vpack.c.bf16 %v294, %v280
      %298 = vst [vmem:[%s196] sm:$0xff] %v296
      %299 = vst [vmem:[%s196 + $0x8] sm:$0xff] %v297
      %v300 = vld [vmem:[%s3] sm:$0x3]
      %v301 = vadd.f32 %v278, %v280
      %v302 = vrot.slane %v301, 4
      %v303 = vadd.f32 %v301, %v302
      %v304 = vrot.slane %v303, 2
      %v305 = vadd.f32 %v303, %v304
      %v306 = vrot.slane %v305, 1
      %v307 = vadd.f32 %v305, %v306
      %v308 = vadd.f32 %v292, %v294
      %v309 = vrot.slane %v308, 4
      %v310 = vadd.f32 %v308, %v309
      %v311 = vrot.slane %v310, 2
      %v312 = vadd.f32 %v310, %v311
      %v313 = vrot.slane %v312, 1
      %v314 = vadd.f32 %v312, %v313
      %v317 = vrot.slane %v314, 7
      %vm318 = vcmask 1040384
      %v319 = vsel %vm318, %v307, %v317
      %v321 = vadd.f32 %v300, %v319
      %v322 = vlaneseq
      %vm323 = vcmp.ge.s32.totalorder %v322, 0
      %vm324 = vcmp.lt.s32.totalorder %v322, 256
      %vm325 = vmand %vm323, %vm324
      %326 = vst.msk [vmem:[%s3] sm:$0x3] %vm325, %v321
      %v327 = vld [vmem:[%s4] sm:$0x3]
      %v328 = vmul.f32 %v278, %v278
      %v329 = vmul.f32 %v292, %v292
      %v330 = vmul.f32 %v280, %v280
      %v331 = vmul.f32 %v294, %v294
      %v332 = vadd.f32 %v328, %v330
      %v333 = vrot.slane %v332, 4
      %v334 = vadd.f32 %v332, %v333
      %v335 = vrot.slane %v334, 2
      %v336 = vadd.f32 %v334, %v335
      %v337 = vrot.slane %v336, 1
      %v338 = vadd.f32 %v336, %v337
      %v339 = vadd.f32 %v329, %v331
      %v340 = vrot.slane %v339, 4
      %v341 = vadd.f32 %v339, %v340
      %v342 = vrot.slane %v341, 2
      %v343 = vadd.f32 %v341, %v342
      %v344 = vrot.slane %v343, 1
      %v345 = vadd.f32 %v343, %v344
      %v348 = vrot.slane %v345, 7
      %v349 = vsel %vm318, %v338, %v348
      %v351 = vadd.f32 %v327, %v349
      %352 = vst.msk [vmem:[%s4] sm:$0x3] %vm325, %v351
      %s353 = smul.u32 2, %s16
      %p354 = scmp.lt.s32.totalorder %s353, 3
      %s355 = scalar_select %p354, %s353, 3
      %s356 = smul.addr %s355, 2
      %s357 = smul.addr %s356, 4
      %s358 = scalar_lea.vmem %s2, %s357
      // Predicated region
      $region33: #{residual_block_pallas.4} parent=27 // pred_check
        %p359 = pneg %p81
      $region34: #{residual_block_pallas.4} parent=27 // pred_check_branch
        %361 = sbr.rel (%p359) target = $region36
      $region35: #{residual_block_pallas.4} parent=27 // pred_region
        %s362 = smul.u32 2, %s16
      $region36: #{residual_block_pallas.4} parent=27 // pred_fallthru
        _
      // Predicated region
      $region37: #{residual_block_pallas.4} parent=27 // pred_check
        %p363 = pneg %p102
      $region38: #{residual_block_pallas.4} parent=27 // pred_check_branch
        %365 = sbr.rel (%p363) target = $region40
      $region39: #{residual_block_pallas.4} parent=27 // pred_region
        _
      $region40: #{residual_block_pallas.4} parent=27 // pred_fallthru
        _
      // Predicated region
      $region41: #{residual_block_pallas.4} parent=27 // pred_check
        %p366 = pneg %p123
      $region42: #{residual_block_pallas.4} parent=27 // pred_check_branch
        %368 = sbr.rel (%p366) target = $region44
      $region43: #{residual_block_pallas.4} parent=27 // pred_region
        _
      $region44: #{residual_block_pallas.4} parent=27 // pred_fallthru
        _
      // Predicated region
      $region45: #{residual_block_pallas.4} parent=27 // pred_check
        %p369 = pneg %p102
      $region46: #{residual_block_pallas.4} parent=27 // pred_check_branch
        %371 = sbr.rel (%p369) target = $region48
      $region47: #{residual_block_pallas.4} parent=27 // pred_region
        _
      $region48: #{residual_block_pallas.4} parent=27 // pred_fallthru
        _
      // Predicated region
      $region49: #{residual_block_pallas.4} parent=27 // pred_check
        %p372 = pneg %p123
      $region50: #{residual_block_pallas.4} parent=27 // pred_check_branch
        %374 = sbr.rel (%p372) target = $region52
      $region51: #{residual_block_pallas.4} parent=27 // pred_region
        _
      $region52: #{residual_block_pallas.4} parent=27 // pred_fallthru
        _
    $region28: #{residual_block_pallas.4} parent=5 // pred_fallthru
      _
    %p375 = scmp.le.s32.totalorder 2, %s11
    // Predicated region
    $region53: #{residual_block_pallas.4} parent=5 // pred_check
      %p376 = pneg %p375
    $region54: #{residual_block_pallas.4} parent=5 // pred_check_branch
      %378 = sbr.rel (%p376) target = $region56
    $region55: #{residual_block_pallas.4} parent=5 // pred_region
      %s379 = ssub.s32 %s11, 2
      // Predicated region
      $region57: #{residual_block_pallas.4} parent=55 // pred_check
        %p380 = pneg %p87
      $region58: #{residual_block_pallas.4} parent=55 // pred_check_branch
        %382 = sbr.rel (%p380) target = $region60
      $region59: #{residual_block_pallas.4} parent=55 // pred_region
        %s383 = smul.u32 2, %s17
        %p384 = scmp.lt.s32.totalorder %s383, 3
        %s385 = scalar_select %p384, %s383, 3
        %s386 = smul.addr %s385, 2
        %s387 = smul.addr %s386, 4
        %s388 = scalar_lea.vmem %s2, %s387
      $region60: #{residual_block_pallas.4} parent=55 // pred_fallthru
        _
    $region56: #{residual_block_pallas.4} parent=5 // pred_fallthru
      _
  $region6: #{residual_block_pallas.4} parent=0 // loop_footer
    %s15 = sadd.s32 1, %s11
  $region7: #{residual_block_pallas.4} parent=0 // loop_footer_branch
    %10 = sbr.rel target = $region3
  $region8: #{residual_block_pallas.4} parent=0 // loop_exit
    _

// kernel: tile.43
$region0: #{tile.43}
  #allocation0 [shape = 's32[1]{0}', space=sflag, size = 0x4, scoped, tag = 'scoped memory for tile.43']
  %s0 = inlined_call_operand.vmem [shape: f32[8], index: 0, kind: input, shape index: {}]
  %s1 = inlined_call_operand.vmem [shape: f32[16,8], index: 1, kind: output, shape index: {}]
  // Predicated region
  $region2: #{tile.43} parent=0 // pred_check
    _
  $region3: #{tile.43} parent=0 // pred_check_branch
    %3 = sbr.rel (0) target = $region5
  $region4: #{tile.43} parent=0 // pred_region
    _
  $region5: #{tile.43} parent=0 // pred_fallthru
    _
  %v4 = vld [vmem:[%s0] ss:$0 sm:$0xff]
  %5 = vst [vmem:[%s1] sm:$0xff] %v4
  %s6 = scalar_lea.vmem %s1, 8
  %7 = vst [vmem:[%s6] sm:$0xff] %v4

// kernel: tile.44
$region0: #{tile.44}
  %s0 = inlined_call_operand.vmem [shape: f32[16,8], index: 0, kind: input, shape index: {}]
  %s1 = inlined_call_operand.vmem [shape: f32[1,128], index: 1, kind: output, shape index: {}]
  $region1: #{tile.44} parent=0
    #allocation0 [shape = 'u8[4096]{0}', space=vmem, size = 0x1000, scoped, tag = 'scoped mem for output reshape']
    %v2 = vld [vmem:[%s0] sm:$0x1]
    %vm3 = vcmask 64512
    %4 = vst.msk [vmem:[#allocation0] sm:$0x1] %vm3, %v2
    %s5 = scalar_lea.vmem %s0, 15
    %v6 = vld [vmem:[%s5] sm:$0x1]
    %7 = vrot.lane.b32.xlu0 %v6, 120
    %v8 = vpop.permute.xlu0 %7
    %vm9 = vcmask 1048512
    %10 = vst.msk [vmem:[#allocation0] sm:$0x1] %vm9, %v8
    %s11 = scalar_lea.vmem %s0, 14
    %v12 = vld [vmem:[%s11] sm:$0x1]
    %13 = vrot.lane.b32.xlu0 %v12, 112
    %v14 = vpop.permute.xlu0 %13
    %vm15 = vcmask 982912
    %16 = vst.msk [vmem:[#allocation0] sm:$0x1] %vm15, %v14
    %s17 = scalar_lea.vmem %s0, 13
    %v18 = vld [vmem:[%s17] sm:$0x1]
    %19 = vrot.lane.b32.xlu0 %v18, 104
    %v20 = vpop.permute.xlu0 %19
    %vm21 = vcmask 917312
    %22 = vst.msk [vmem:[#allocation0] sm:$0x1] %vm21, %v20
    %s23 = scalar_lea.vmem %s0, 12
    %v24 = vld [vmem:[%s23] sm:$0x1]
    %25 = vrot.lane.b32.xlu0 %v24, 96
    %v26 = vpop.permute.xlu0 %25
    %vm27 = vcmask 851712
    %28 = vst.msk [vmem:[#allocation0] sm:$0x1] %vm27, %v26
    %s29 = scalar_lea.vmem %s0, 11
    %v30 = vld [vmem:[%s29] sm:$0x1]
    %31 = vrot.lane.b32.xlu0 %v30, 88
    %v32 = vpop.permute.xlu0 %31
    %vm33 = vcmask 786112
    %34 = vst.msk [vmem:[#allocation0] sm:$0x1] %vm33, %v32
    %s35 = scalar_lea.vmem %s0, 10
    %v36 = vld [vmem:[%s35] sm:$0x1]
    %37 = vrot.lane.b32.xlu0 %v36, 80
    %v38 = vpop.permute.xlu0 %37
    %vm39 = vcmask 720512
    %40 = vst.msk [vmem:[#allocation0] sm:$0x1] %vm39, %v38
    %s41 = scalar_lea.vmem %s0, 9
    %v42 = vld [vmem:[%s41] sm:$0x1]
    %43 = vrot.lane.b32.xlu0 %v42, 72
    %v44 = vpop.permute.xlu0 %43
    %vm45 = vcmask 654912
    %46 = vst.msk [vmem:[#allocation0] sm:$0x1] %vm45, %v44
    %s47 = scalar_lea.vmem %s0, 8
    %v48 = vld [vmem:[%s47] sm:$0x1]
    %49 = vrot.lane.b32.xlu0 %v48, 64
    %v50 = vpop.permute.xlu0 %49
    %vm51 = vcmask 589312
    %52 = vst.msk [vmem:[#allocation0] sm:$0x1] %vm51, %v50
    %s53 = scalar_lea.vmem %s0, 7
    %v54 = vld [vmem:[%s53] sm:$0x1]
    %55 = vrot.lane.b32.xlu0 %v54, 56
    %v56 = vpop.permute.xlu0 %55
    %vm57 = vcmask 523712
    %58 = vst.msk [vmem:[#allocation0] sm:$0x1] %vm57, %v56
    %s59 = scalar_lea.vmem %s0, 6
    %v60 = vld [vmem:[%s59] sm:$0x1]
    %61 = vrot.lane.b32.xlu0 %v60, 48
    %v62 = vpop.permute.xlu0 %61
    %vm63 = vcmask 458112
    %64 = vst.msk [vmem:[#allocation0] sm:$0x1] %vm63, %v62
    %s65 = scalar_lea.vmem %s0, 5
    %v66 = vld [vmem:[%s65] sm:$0x1]
    %67 = vrot.lane.b32.xlu0 %v66, 40
    %v68 = vpop.permute.xlu0 %67
    %vm69 = vcmask 392512
    %70 = vst.msk [vmem:[#allocation0] sm:$0x1] %vm69, %v68
    %s71 = scalar_lea.vmem %s0, 4
    %v72 = vld [vmem:[%s71] sm:$0x1]
    %73 = vrot.lane.b32.xlu0 %v72, 32
    %v74 = vpop.permute.xlu0 %73
    %vm75 = vcmask 326912
    %76 = vst.msk [vmem:[#allocation0] sm:$0x1] %vm75, %v74
    %s77 = scalar_lea.vmem %s0, 3
    %v78 = vld [vmem:[%s77] sm:$0x1]
    %79 = vrot.lane.b32.xlu0 %v78, 24
    %v80 = vpop.permute.xlu0 %79
    %vm81 = vcmask 261312
    %82 = vst.msk [vmem:[#allocation0] sm:$0x1] %vm81, %v80
    %s83 = scalar_lea.vmem %s0, 2
    %v84 = vld [vmem:[%s83] sm:$0x1]
    %85 = vrot.lane.b32.xlu0 %v84, 16
    %v86 = vpop.permute.xlu0 %85
    %vm87 = vcmask 195712
    %88 = vst.msk [vmem:[#allocation0] sm:$0x1] %vm87, %v86
    %s89 = scalar_lea.vmem %s0, 1
    %v90 = vld [vmem:[%s89] sm:$0x1]
    %91 = vrot.lane.b32.xlu0 %v90, 8
    %v92 = vpop.permute.xlu0 %91
    %vm93 = vcmask 130112
    %94 = vst.msk [vmem:[#allocation0] sm:$0x1] %vm93, %v92
    %s96 = ssub.s32 2, 1
    %v97 = vld [vmem:[#allocation0] sm:%s96]
    %s99 = ssub.s32 2, 1
    %100 = vst [vmem:[%s1] sm:%s99] %v97

// kernel: residual_block_pallas.5
$region0: #{residual_block_pallas.5}
  #allocation0 [shape = 'u32[]', space=smem, size = 0x4, offset = 0x4, fixed_abs, tag = 'smem constant byte address 0x4 - core index']
  #allocation1 [shape = 'u32[72,128]{1,0:T(1,128)}', space=vmem, size = 0x9000, scoped, tag = 'internal scratch']
  %s0 = inlined_call_operand.vmem [shape: bf16[32,256], index: 0, kind: input, shape index: {}]
  %s1 = inlined_call_operand.vmem [shape: f32[2,128], index: 1, kind: input, shape index: {}]
  %s2 = inlined_call_operand.vmem [shape: bf16[384,128], index: 2, kind: input, shape index: {}]
  %s3 = inlined_call_operand.vmem [shape: bf16[32,128], index: 3, kind: output, shape index: {0}]
  %s4 = inlined_call_operand.vmem [shape: f32[1,128], index: 4, kind: output, shape index: {1}]
  %s5 = inlined_call_operand.vmem [shape: f32[1,128], index: 5, kind: output, shape index: {2}]
  %6 = xla_tuple %s3, %s4, %s5
  %s7 = sld [smem:[#allocation0]]
  $region106: #{residual_block_pallas.5} parent=0
    _
  %s9 = ssub.s32 1, %s7
  %s10 = scalar_select 0, %s9, %s7
  $region1: #{residual_block_pallas.5} parent=0
    #allocation2 [shape = 'u8[8192]{0}', space=vmem, size = 0x2000, scoped, tag = 'input window, operand 0']
    loop: start=0, step=1, limit=4
    $region2: #{residual_block_pallas.5} parent=1 // loop_pre_header
      _
    $region3: #{residual_block_pallas.5} parent=1 // loop_header
      %s12 = sphi 0, %s16
      %p13 = scmp.ge.s32.totalorder %s12, 4
      %s22 = sphi 0, %s24
      %s25 = sphi 0, %s22
      %s26 = sphi 0, %s25
      %s42 = sphi 0, %s26
      %s46 = sphi 0, %s46
      %s48 = sphi 0, %s46
      %s49 = sphi 0, %s48
      %s63 = sphi 0, %s49
      %s67 = sphi 0, %s67
      %s69 = sphi 0, %s67
      %s70 = sphi 0, %s69
      %s84 = sphi 0, %s70
      %s90 = sphi 0, %s92
      %s93 = sphi 0, %s90
      %s94 = sphi 0, %s93
      %s110 = sphi 0, %s94
      %s114 = sphi 0, %s114
      %s116 = sphi 0, %s114
      %s117 = sphi 0, %s116
      %s131 = sphi 0, %s117
      %s135 = sphi 0, %s135
      %s137 = sphi 0, %s135
      %s138 = sphi 0, %s137
      %s152 = sphi 0, %s138
    $region4: #{residual_block_pallas.5} parent=1 // loop_header_branch
      %15 = sbr.rel (%p13) target = $region8
    $region5: #{residual_block_pallas.5} parent=1 // loop_body
      %s17 = ssub.s32 %s12, 1
      %s18 = ssub.s32 %s12, 2
      %s19 = sadd.s32 %s12, 1
      %s20 = ssub.s32 %s12, %s19
      %p21 = scmp.eq.s32.totalorder %s20, 0
      %s23 = sadd.s32 %s22, 1
      %s24 = scalar_select %p21, %s22, %s23
      %p27 = pneg %p21
      %p28 = scmp.eq.s32.totalorder %s12, 1
      %p29 = por %p27, %p28
      %p30 = scmp.ne.s32.totalorder %s22, %s25
      %p31 = scmp.eq.s32.totalorder %s12, 0
      %p32 = por %p30, %p31
      %p33 = scmp.ne.s32.totalorder %s22, %s25
      %p34 = scmp.eq.s32.totalorder %s17, 1
      %p35 = por %p33, %p34
      %p36 = scmp.ne.s32.totalorder %s25, %s26
      %p37 = scmp.eq.s32.totalorder %s17, 0
      %p38 = por %p36, %p37
      %p39 = scmp.ne.s32.totalorder %s25, %s26
      %p40 = scmp.eq.s32.totalorder %s18, 1
      %p41 = por %p39, %p40
      %p43 = scmp.ne.s32.totalorder %s26, %s42
      %p44 = scmp.eq.s32.totalorder %s18, 0
      %p45 = por %p43, %p44
      %s47 = sadd.s32 %s46, 1
      %p50 = scmp.eq.s32.totalorder %s12, 1
      %p51 = scmp.ne.s32.totalorder %s46, %s48
      %p52 = scmp.eq.s32.totalorder %s12, 0
      %p53 = por %p51, %p52
      %p54 = scmp.ne.s32.totalorder %s46, %s48
      %p55 = scmp.eq.s32.totalorder %s17, 1
      %p56 = por %p54, %p55
      %p57 = scmp.ne.s32.totalorder %s48, %s49
      %p58 = scmp.eq.s32.totalorder %s17, 0
      %p59 = por %p57, %p58
      %p60 = scmp.ne.s32.totalorder %s48, %s49
      %p61 = scmp.eq.s32.totalorder %s18, 1
      %p62 = por %p60, %p61
      %p64 = scmp.ne.s32.totalorder %s49, %s63
      %p65 = scmp.eq.s32.totalorder %s18, 0
      %p66 = por %p64, %p65
      %s68 = sadd.s32 %s67, 1
      %p71 = scmp.eq.s32.totalorder %s12, 1
      %p72 = scmp.ne.s32.totalorder %s67, %s69
      %p73 = scmp.eq.s32.totalorder %s12, 0
      %p74 = por %p72, %p73
      %p75 = scmp.ne.s32.totalorder %s67, %s69
      %p76 = scmp.eq.s32.totalorder %s17, 1
      %p77 = por %p75, %p76
      %p78 = scmp.ne.s32.totalorder %s69, %s70
      %p79 = scmp.eq.s32.totalorder %s17, 0
      %p80 = por %p78, %p79
      %p81 = scmp.ne.s32.totalorder %s69, %s70
      %p82 = scmp.eq.s32.totalorder %s18, 1
      %p83 = por %p81, %p82
      %p85 = scmp.ne.s32.totalorder %s70, %s84
      %p86 = scmp.eq.s32.totalorder %s18, 0
      %p87 = por %p85, %p86
      %s88 = ssub.s32 %s12, %s19
      %p89 = scmp.eq.s32.totalorder %s88, 0
      %s91 = sadd.s32 %s90, 1
      %s92 = scalar_select %p89, %s90, %s91
      %p95 = pneg %p89
      %p96 = scmp.eq.s32.totalorder %s12, 1
      %p97 = por %p95, %p96
      %p98 = scmp.ne.s32.totalorder %s90, %s93
      %p99 = scmp.eq.s32.totalorder %s12, 0
      %p100 = por %p98, %p99
      %p101 = scmp.ne.s32.totalorder %s90, %s93
      %p102 = scmp.eq.s32.totalorder %s17, 1
      %p103 = por %p101, %p102
      %p104 = scmp.ne.s32.totalorder %s93, %s94
      %p105 = scmp.eq.s32.totalorder %s17, 0
      %p106 = por %p104, %p105
      %p107 = scmp.ne.s32.totalorder %s93, %s94
      %p108 = scmp.eq.s32.totalorder %s18, 1
      %p109 = por %p107, %p108
      %p111 = scmp.ne.s32.totalorder %s94, %s110
      %p112 = scmp.eq.s32.totalorder %s18, 0
      %p113 = por %p111, %p112
      %s115 = sadd.s32 %s114, 1
      %p118 = scmp.eq.s32.totalorder %s12, 1
      %p119 = scmp.ne.s32.totalorder %s114, %s116
      %p120 = scmp.eq.s32.totalorder %s12, 0
      %p121 = por %p119, %p120
      %p122 = scmp.ne.s32.totalorder %s114, %s116
      %p123 = scmp.eq.s32.totalorder %s17, 1
      %p124 = por %p122, %p123
      %p125 = scmp.ne.s32.totalorder %s116, %s117
      %p126 = scmp.eq.s32.totalorder %s17, 0
      %p127 = por %p125, %p126
      %p128 = scmp.ne.s32.totalorder %s116, %s117
      %p129 = scmp.eq.s32.totalorder %s18, 1
      %p130 = por %p128, %p129
      %p132 = scmp.ne.s32.totalorder %s117, %s131
      %p133 = scmp.eq.s32.totalorder %s18, 0
      %p134 = por %p132, %p133
      %s136 = sadd.s32 %s135, 1
      %p139 = scmp.eq.s32.totalorder %s12, 1
      %p140 = scmp.ne.s32.totalorder %s135, %s137
      %p141 = scmp.eq.s32.totalorder %s12, 0
      %p142 = por %p140, %p141
      %p143 = scmp.ne.s32.totalorder %s135, %s137
      %p144 = scmp.eq.s32.totalorder %s17, 1
      %p145 = por %p143, %p144
      %p146 = scmp.ne.s32.totalorder %s137, %s138
      %p147 = scmp.eq.s32.totalorder %s17, 0
      %p148 = por %p146, %p147
      %p149 = scmp.ne.s32.totalorder %s137, %s138
      %p150 = scmp.eq.s32.totalorder %s18, 1
      %p151 = por %p149, %p150
      %p153 = scmp.ne.s32.totalorder %s138, %s152
      %p154 = scmp.eq.s32.totalorder %s18, 0
      %p155 = por %p153, %p154
      %p156 = scmp.le.s32.totalorder 1, %s12
      %p157 = scmp.lt.s32.totalorder %s12, 3
      %p158 = pnand %p156, %p157
      %p159 = pneg %p158
      // Predicated region
      $region9: #{residual_block_pallas.5} parent=5 // pred_check
        _
      $region10: #{residual_block_pallas.5} parent=5 // pred_check_branch
        %161 = sbr.rel (%p158) target = $region12
      $region11: #{residual_block_pallas.5} parent=5 // pred_region
        %s162 = ssub.s32 %s12, 1
        // Predicated region
        $region13: #{residual_block_pallas.5} parent=11 // pred_check
          %p163 = pneg %p59
        $region14: #{residual_block_pallas.5} parent=11 // pred_check_branch
          %165 = sbr.rel (%p163) target = $region16
        $region15: #{residual_block_pallas.5} parent=11 // pred_region
          _
        $region16: #{residual_block_pallas.5} parent=11 // pred_fallthru
          _
        // Predicated region
        $region17: #{residual_block_pallas.5} parent=11 // pred_check
          %p166 = pneg %p80
        $region18: #{residual_block_pallas.5} parent=11 // pred_check_branch
          %168 = sbr.rel (%p166) target = $region20
        $region19: #{residual_block_pallas.5} parent=11 // pred_region
          _
        $region20: #{residual_block_pallas.5} parent=11 // pred_fallthru
          _
      $region12: #{residual_block_pallas.5} parent=5 // pred_fallthru
        _
      %p169 = scmp.lt.s32.totalorder %s12, 2
      // Predicated region
      $region21: #{residual_block_pallas.5} parent=5 // pred_check
        %p170 = pneg %p169
      $region22: #{residual_block_pallas.5} parent=5 // pred_check_branch
        %172 = sbr.rel (%p170) target = $region24
      $region23: #{residual_block_pallas.5} parent=5 // pred_region
        // Predicated region
        $region25: #{residual_block_pallas.5} parent=23 // pred_check
          %p173 = pneg %p32
        $region26: #{residual_block_pallas.5} parent=23 // pred_check_branch
          %175 = sbr.rel (%p173) target = $region28
        $region27: #{residual_block_pallas.5} parent=23 // pred_region
          %s176 = sand.u32 %s22, 1
          %s177 = sand.u32 %s22, 1
          %s178 = smul.addr %s177, 8
          %s179 = scalar_lea.vmem [#allocation2], %s178
          %s180 = smul.u32 2, %s12
          %s181 = smul.addr %s180, 2
          %s182 = smul.addr %s181, 4
          %s183 = scalar_lea.vmem %s0, %s182
          // Predicated region
          $region29: #{residual_block_pallas.5} parent=27 // pred_check
            _
          $region30: #{residual_block_pallas.5} parent=27 // pred_check_branch
            %185 = sbr.rel (0) target = $region32
          $region31: #{residual_block_pallas.5} parent=27 // pred_region
            // Predicated region
            $region33: #{residual_block_pallas.5} parent=31 // pred_check
              _
            $region34: #{residual_block_pallas.5} parent=31 // pred_check_branch
              %187 = sbr.rel target = $region36
            $region35: #{residual_block_pallas.5} parent=31 // pred_region
              // Predicated region
              $region48: #{residual_block_pallas.5} parent=35 // pred_check
                _
              $region49: #{residual_block_pallas.5} parent=35 // pred_check_branch
                %205 = sbr.rel (0) target = $region51
              $region50: #{residual_block_pallas.5} parent=35 // pred_region
                loop: start=0, step=1, limit=1
                $region52: #{residual_block_pallas.5} parent=50 // loop_pre_header
                  _
                $region53: #{residual_block_pallas.5} parent=50 // loop_header
                  %s207 = sphi 0, %s211
                  %p208 = scmp.ge.s32.totalorder %s207, 1
                  %s212 = sphi %s183, %s183
                  %s213 = sphi %s179, %s179
                $region54: #{residual_block_pallas.5} parent=50 // loop_header_branch
                  %210 = sbr.rel (%p208) target = $region58
                $region55: #{residual_block_pallas.5} parent=50 // loop_body
                  _
                $region56: #{residual_block_pallas.5} parent=50 // loop_footer
                  %s211 = sadd.s32 1, %s207
                $region57: #{residual_block_pallas.5} parent=50 // loop_footer_branch
                  %206 = sbr.rel target = $region53
                $region58: #{residual_block_pallas.5} parent=50 // loop_exit
                  _
                %s215 = ssub.s32 16, 1
                loop: start=0, step=1, limit=1
                $region59: #{residual_block_pallas.5} parent=50 // loop_pre_header
                  _
                $region60: #{residual_block_pallas.5} parent=50 // loop_header
                  %s217 = sphi 0, %s221
                  %p218 = scmp.ge.s32.totalorder %s217, 1
                  %s222 = sphi %s183, %s183
                  %s223 = sphi %s179, %s179
                $region61: #{residual_block_pallas.5} parent=50 // loop_header_branch
                  %220 = sbr.rel (%p218) target = $region65
                $region62: #{residual_block_pallas.5} parent=50 // loop_body
                  %v224 = vld [vmem:[%s222] sm:%s215]
                  %225 = vst [vmem:[%s223] sm:%s215] %v224
                  %v226 = vld [vmem:[%s222 + $0x8] sm:%s215]
                  %227 = vst [vmem:[%s223 + $0x4] sm:%s215] %v226
                $region63: #{residual_block_pallas.5} parent=50 // loop_footer
                  %s221 = sadd.s32 1, %s217
                $region64: #{residual_block_pallas.5} parent=50 // loop_footer_branch
                  %216 = sbr.rel target = $region60
                $region65: #{residual_block_pallas.5} parent=50 // loop_exit
                  _
              $region51: #{residual_block_pallas.5} parent=35 // pred_fallthru
                _
            $region36: #{residual_block_pallas.5} parent=31 // pred_fallthru
              _
            // Predicated region
            $region37: #{residual_block_pallas.5} parent=31 // pred_check
              _
            $region38: #{residual_block_pallas.5} parent=31 // pred_check_branch
              %189 = sbr.rel (0) target = $region40
            $region39: #{residual_block_pallas.5} parent=31 // pred_region
              %s191 = ssub.s32 16, 1
              loop: start=0, step=1, limit=1
              $region41: #{residual_block_pallas.5} parent=39 // loop_pre_header
                _
              $region42: #{residual_block_pallas.5} parent=39 // loop_header
                %s193 = sphi 0, %s197
                %p194 = scmp.ge.s32.totalorder %s193, 1
                %s198 = sphi %s183, %s183
                %s199 = sphi %s179, %s179
              $region43: #{residual_block_pallas.5} parent=39 // loop_header_branch
                %196 = sbr.rel (%p194) target = $region47
              $region44: #{residual_block_pallas.5} parent=39 // loop_body
                %v200 = vld [vmem:[%s198] sm:%s191]
                %201 = vst [vmem:[%s199] sm:%s191] %v200
                %v202 = vld [vmem:[%s198 + $0x8] sm:%s191]
                %203 = vst [vmem:[%s199 + $0x4] sm:%s191] %v202
              $region45: #{residual_block_pallas.5} parent=39 // loop_footer
                %s197 = sadd.s32 1, %s193
              $region46: #{residual_block_pallas.5} parent=39 // loop_footer_branch
                %192 = sbr.rel target = $region42
              $region47: #{residual_block_pallas.5} parent=39 // loop_exit
                _
            $region40: #{residual_block_pallas.5} parent=31 // pred_fallthru
              _
          $region32: #{residual_block_pallas.5} parent=27 // pred_fallthru
            _
          %228 = vnop
        $region28: #{residual_block_pallas.5} parent=23 // pred_fallthru
          _
      $region24: #{residual_block_pallas.5} parent=5 // pred_fallthru
        _
      %p229 = scmp.le.s32.totalorder 1, %s12
      %p230 = scmp.lt.s32.totalorder %s12, 3
      %p231 = pnand %p229, %p230
      %p232 = pneg %p231
      // Predicated region
      $region66: #{residual_block_pallas.5} parent=5 // pred_check
        _
      $region67: #{residual_block_pallas.5} parent=5 // pred_check_branch
        %234 = sbr.rel (%p231) target = $region69
      $region68: #{residual_block_pallas.5} parent=5 // pred_region
        %s235 = ssub.s32 %s12, 1
        %s236 = sand.u32 %s25, 1
        %s237 = sand.u32 %s25, 1
        %s238 = smul.addr %s237, 8
        %s239 = scalar_lea.vmem [#allocation2], %s238
        // Predicated region
        $region70: #{residual_block_pallas.5} parent=68 // pred_check
          %p240 = pneg %p38
        $region71: #{residual_block_pallas.5} parent=68 // pred_check_branch
          %242 = sbr.rel (%p240) target = $region73
        $region72: #{residual_block_pallas.5} parent=68 // pred_region
          _
        $region73: #{residual_block_pallas.5} parent=68 // pred_fallthru
          _
        %s243 = sand.u32 %s25, 1
        %s244 = sand.u32 %s25, 1
        %s245 = smul.addr %s244, 8
        %s246 = scalar_lea.vmem [#allocation2], %s245
        %p247 = pneg %p38
        %p248 = pneg %p35
        %p249 = pneg %p59
        %p250 = pneg %p56
        %p251 = pneg %p80
        %p252 = pneg %p77
        %p253 = pneg %p106
        %p254 = pneg %p103
        %s255 = smul.u32 2, %s17
        %p256 = scmp.lt.s32.totalorder %s255, 3
        %s257 = scalar_select %p256, %s255, 3
        %s258 = smul.addr %s257, 4
        %s259 = scalar_lea.vmem %s3, %s258
        %p260 = pneg %p127
        %p261 = pneg %p124
        %p262 = pneg %p148
        %p263 = pneg %p145
        %s264 = smul.u32 2, %s17
        %s265 = smul.u32 2, %s17
        %p266 = scmp.lt.s32.totalorder %s265, 3
        %s267 = scalar_select %p266, %s265, 3
        %s268 = smul.addr %s267, 4
        %s269 = scalar_lea.vmem %s3, %s268
        %s270 = smul.u32 2, %s17
        %p271 = scmp.eq.s32.totalorder %s17, 0
        // Predicated region
        $region74: #{residual_block_pallas.5} parent=68 // pred_check
          %p272 = pneg %p271
        $region75: #{residual_block_pallas.5} parent=68 // pred_check_branch
          %274 = sbr.rel (%p272) target = $region77
        $region76: #{residual_block_pallas.5} parent=68 // pred_region
          %275 = vst [vmem:[%s4] sm:$0x1] 0.0
          %276 = vst [vmem:[%s5] sm:$0x1] 0.0
        $region77: #{residual_block_pallas.5} parent=68 // pred_fallthru
          _
        %v277 = vld [vmem:[%s1] sm:$0x3]
        %v278 = vld [vmem:[%s239] sm:$0xf]
        %v279 = vld [vmem:[%s239 + $0x4] sm:$0xf]
        %v280 = vunpack.c.l.bf16 %v278
        %v281 = vunpack.c.l.bf16 %v279
        %v282 = vperm.slane %v277, 0
        %v283 = vmul.f32 %v280, %v282
        %v284 = vmul.f32 %v281, %v282
        %v285 = vperm.slane %v277, 1
        %v286 = vadd.f32 %v283, %v285
        %v287 = vadd.f32 %v284, %v285
        %v288 = vmax.f32 %v286, 0.0
        %v289 = vmax.f32 %v287, 0.0
        %v290 = vlaneseq
        %v291 = vshrl.u32 %v290, 7
        %v292 = vadd.s32 %v291, 8
        %vm293 = vcmp.lt.s32.totalorder %v291, 0
        %v294 = vsub.s32 0, %v291
        %v295 = vsel %vm293, %v294, %v291
        %v296 = vshrl.u32 %v295, 4
        %v297 = vand.u32 %v295, 15
        %v298 = vsub.s32 0, %v297
        %v299 = vsel %vm293, %v298, %v297
        %vm300 = vcmp.lt.s32.totalorder %v292, 0
        %v301 = vsub.s32 0, %v292
        %v302 = vsel %vm300, %v301, %v292
        %v303 = vshrl.u32 %v302, 4
        %v304 = vand.u32 %v302, 15
        %v305 = vsub.s32 0, %v304
        %v306 = vsel %vm300, %v305, %v304
        %vm307 = vcmp.ne.s32.totalorder %v299, 0
        %vm308 = vcmp.ne.s32.totalorder %v306, 0
        %vm309 = vcmp.lt.s32.totalorder %v299, 0
        %vm310 = vcmp.lt.s32.totalorder %v306, 0
        %vm311 = vmand %vm309, %vm307
        %vm312 = vmand %vm310, %vm308
        %v313 = vadd.s32 %v299, 16
        %v314 = vadd.s32 %v306, 16
        %v315 = vsel %vm311, %v313, %v299
        %v316 = vsel %vm312, %v314, %v306
        %vm317 = vcmp.ne.s32.totalorder %v315, 0
        %vm318 = vcmp.ne.s32.totalorder %v316, 0
        %v319 = vrot.slane %v288, 7
        %v320 = vrot.slane %v289, 7
        %vm321 = vcmp.lt.s32.totalorder %v291, 1
        %v322 = vsel %vm321, %v319, %v320
        %v323 = vsel %vm321, %v320, %v319
        %v324 = vsel %vm317, %v323, 0.0
        %v325 = vsel %vm318, %v322, 0.0
        %vm326 = vcmp.ne.s32.totalorder %v315, 15
        %vm327 = vcmp.ne.s32.totalorder %v316, 15
        %v328 = vrot.slane %v288, 1
        %v329 = vrot.slane %v289, 1
        %vm330 = vcmp.lt.s32.totalorder %v291, 7
        %v331 = vsel %vm330, %v328, %v329
        %v332 = vsel %vm330, %v329, %v328
        %v333 = vsel %vm326, %v331, 0.0
        %v334 = vsel %vm327, %v332, 0.0
        %v335 = vpack.c.bf16 %v325, %v324
        %v336 = vpack.c.bf16 %v289, %v288
        %v337 = vpack.c.bf16 %v334, %v333
        %v338 = vld [vmem:[%s2] sm:$0xf]
        %v339 = vld [vmem:[%s2 + $0x4] sm:$0xf]
        %v340 = vld [vmem:[%s2 + $0x8] sm:$0xf]
        %v341 = vld [vmem:[%s2 + $0xc] sm:$0xf]
        %v342 = vld [vmem:[%s2 + $0x10] sm:$0xf]
        %v343 = vld [vmem:[%s2 + $0x14] sm:$0xf]
        %v344 = vld [vmem:[%s2 + $0x18] sm:$0xf]
        %v345 = vld [vmem:[%s2 + $0x1c] sm:$0xf]
        %v346 = vld [vmem:[%s2 + $0x20] sm:$0xf]
        %v347 = vld [vmem:[%s2 + $0x24] sm:$0xf]
        %v348 = vld [vmem:[%s2 + $0x28] sm:$0xf]
        %v349 = vld [vmem:[%s2 + $0x2c] sm:$0xf]
        %v350 = vld [vmem:[%s2 + $0x30] sm:$0xf]
        %v351 = vld [vmem:[%s2 + $0x34] sm:$0xf]
        %v352 = vld [vmem:[%s2 + $0x38] sm:$0xf]
        %v353 = vld [vmem:[%s2 + $0x3c] sm:$0xf]
        %v354 = vld [vmem:[%s2 + $0x40] sm:$0xf]
        %v355 = vld [vmem:[%s2 + $0x44] sm:$0xf]
        %v356 = vld [vmem:[%s2 + $0x48] sm:$0xf]
        %v357 = vld [vmem:[%s2 + $0x4c] sm:$0xf]
        %v358 = vld [vmem:[%s2 + $0x50] sm:$0xf]
        %v359 = vld [vmem:[%s2 + $0x54] sm:$0xf]
        %v360 = vld [vmem:[%s2 + $0x58] sm:$0xf]
        %v361 = vld [vmem:[%s2 + $0x5c] sm:$0xf]
        %v362 = vld [vmem:[%s2 + $0x60] sm:$0xf]
        %v363 = vld [vmem:[%s2 + $0x64] sm:$0xf]
        %v364 = vld [vmem:[%s2 + $0x68] sm:$0xf]
        %v365 = vld [vmem:[%s2 + $0x6c] sm:$0xf]
        %v366 = vld [vmem:[%s2 + $0x70] sm:$0xf]
        %v367 = vld [vmem:[%s2 + $0x74] sm:$0xf]
        %v368 = vld [vmem:[%s2 + $0x78] sm:$0xf]
        %v369 = vld [vmem:[%s2 + $0x7c] sm:$0xf]
        %v370 = vld [vmem:[%s2 + $0x80] sm:$0xf]
        %v371 = vld [vmem:[%s2 + $0x84] sm:$0xf]
        %v372 = vld [vmem:[%s2 + $0x88] sm:$0xf]
        %v373 = vld [vmem:[%s2 + $0x8c] sm:$0xf]
        %v374 = vld [vmem:[%s2 + $0x90] sm:$0xf]
        %v375 = vld [vmem:[%s2 + $0x94] sm:$0xf]
        %v376 = vld [vmem:[%s2 + $0x98] sm:$0xf]
        %v377 = vld [vmem:[%s2 + $0x9c] sm:$0xf]
        %v378 = vld [vmem:[%s2 + $0xa0] sm:$0xf]
        %v379 = vld [vmem:[%s2 + $0xa4] sm:$0xf]
        %v380 = vld [vmem:[%s2 + $0xa8] sm:$0xf]
        %v381 = vld [vmem:[%s2 + $0xac] sm:$0xf]
        %v382 = vld [vmem:[%s2 + $0xb0] sm:$0xf]
        %v383 = vld [vmem:[%s2 + $0xb4] sm:$0xf]
        %v384 = vld [vmem:[%s2 + $0xb8] sm:$0xf]
        %v385 = vld [vmem:[%s2 + $0xbc] sm:$0xf]
        %v434 = vunpack.c.l.b16 %v338
        %v435 = vunpack.c.l.b16 %v339
        %v436 = vunpack.c.l.b16 %v340
        %v437 = vunpack.c.l.b16 %v341
        %v438 = vunpack.c.l.b16 %v342
        %v439 = vunpack.c.l.b16 %v343
        %v440 = vunpack.c.l.b16 %v344
        %v441 = vunpack.c.l.b16 %v345
        %v442 = vunpack.c.l.b16 %v346
        %v443 = vunpack.c.l.b16 %v347
        %v444 = vunpack.c.l.b16 %v348
        %v445 = vunpack.c.l.b16 %v349
        %v446 = vunpack.c.l.b16 %v350
        %v447 = vunpack.c.l.b16 %v351
        %v448 = vunpack.c.l.b16 %v352
        %v449 = vunpack.c.l.b16 %v353
        %v450 = vunpack.c.l.b16 %v354
        %v451 = vunpack.c.l.b16 %v355
        %v452 = vunpack.c.l.b16 %v356
        %v453 = vunpack.c.l.b16 %v357
        %v454 = vunpack.c.l.b16 %v358
        %v455 = vunpack.c.l.b16 %v359
        %v456 = vunpack.c.l.b16 %v360
        %v457 = vunpack.c.l.b16 %v361
        %v458 = vunpack.c.l.b16 %v362
        %v459 = vunpack.c.l.b16 %v363
        %v460 = vunpack.c.l.b16 %v364
        %v461 = vunpack.c.l.b16 %v365
        %v462 = vunpack.c.l.b16 %v366
        %v463 = vunpack.c.l.b16 %v367
        %v464 = vunpack.c.l.b16 %v368
        %v465 = vunpack.c.l.b16 %v369
        %v466 = vunpack.c.l.b16 %v370
        %v467 = vunpack.c.l.b16 %v371
        %v468 = vunpack.c.l.b16 %v372
        %v469 = vunpack.c.l.b16 %v373
        %v470 = vunpack.c.l.b16 %v374
        %v471 = vunpack.c.l.b16 %v375
        %v472 = vunpack.c.l.b16 %v376
        %v473 = vunpack.c.l.b16 %v377
        %v474 = vunpack.c.l.b16 %v378
        %v475 = vunpack.c.l.b16 %v379
        %v476 = vunpack.c.l.b16 %v380
        %v477 = vunpack.c.l.b16 %v381
        %v478 = vunpack.c.l.b16 %v382
        %v479 = vunpack.c.l.b16 %v383
        %v480 = vunpack.c.l.b16 %v384
        %v481 = vunpack.c.l.b16 %v385
        %v482 = vpack.c.b16 %v435, %v434
        %v483 = vpack.c.b16 %v437, %v436
        %v484 = vpack.c.b16 %v439, %v438
        %v485 = vpack.c.b16 %v441, %v440
        %v486 = vpack.c.b16 %v443, %v442
        %v487 = vpack.c.b16 %v445, %v444
        %v488 = vpack.c.b16 %v447, %v446
        %v489 = vpack.c.b16 %v449, %v448
        %v490 = vpack.c.b16 %v451, %v450
        %v491 = vpack.c.b16 %v453, %v452
        %v492 = vpack.c.b16 %v455, %v454
        %v493 = vpack.c.b16 %v457, %v456
        %v494 = vpack.c.b16 %v459, %v458
        %v495 = vpack.c.b16 %v461, %v460
        %v496 = vpack.c.b16 %v463, %v462
        %v497 = vpack.c.b16 %v465, %v464
        %v498 = vpack.c.b16 %v467, %v466
        %v499 = vpack.c.b16 %v469, %v468
        %v500 = vpack.c.b16 %v471, %v470
        %v501 = vpack.c.b16 %v473, %v472
        %v502 = vpack.c.b16 %v475, %v474
        %v503 = vpack.c.b16 %v477, %v476
        %v504 = vpack.c.b16 %v479, %v478
        %v505 = vpack.c.b16 %v481, %v480
        %530 = vmatpush.bf16.msra.mxu0 %v489
        %531 = vmatpush.bf16.msra.mxu0 %v488
        %532 = vmatpush.bf16.msra.mxu0 %v487
        %533 = vmatpush.bf16.msra.mxu0 %v486
        %534 = vmatpush.bf16.msra.mxu0 %v485
        %535 = vmatpush.bf16.msra.mxu0 %v484
        %536 = vmatpush.bf16.msra.mxu0 %v483
        %537 = vmatpush.bf16.msra.mxu0 %v482
        %538 = vmatmul.bf16.gmra.mxu0 %v335
        %v539 = vpop.f32.mrf.mxu0
        %v540 = vadd.f32 0.0, %v539
        %v541 = vpop.f32.mrf.mxu0
        %v542 = vadd.f32 0.0, %v541
        %543 = vdwg.mxu0
        %544 = vmatpush.bf16.msra.mxu0 %v497
        %545 = vmatpush.bf16.msra.mxu0 %v496
        %546 = vmatpush.bf16.msra.mxu0 %v495
        %547 = vmatpush.bf16.msra.mxu0 %v494
        %548 = vmatpush.bf16.msra.mxu0 %v493
        %549 = vmatpush.bf16.msra.mxu0 %v492
        %550 = vmatpush.bf16.msra.mxu0 %v491
        %551 = vmatpush.bf16.msra.mxu0 %v490
        %552 = vmatmul.bf16.gmra.mxu0 %v336
        %v553 = vpop.f32.mrf.mxu0
        %v554 = vadd.f32 %v540, %v553
        %v555 = vpop.f32.mrf.mxu0
        %v556 = vadd.f32 %v542, %v555
        %557 = vdwg.mxu0
        %558 = vmatpush.bf16.msra.mxu0 %v505
        %559 = vmatpush.bf16.msra.mxu0 %v504
        %560 = vmatpush.bf16.msra.mxu0 %v503
        %561 = vmatpush.bf16.msra.mxu0 %v502
        %562 = vmatpush.bf16.msra.mxu0 %v501
        %563 = vmatpush.bf16.msra.mxu0 %v500
        %564 = vmatpush.bf16.msra.mxu0 %v499
        %565 = vmatpush.bf16.msra.mxu0 %v498
        %566 = vmatmul.bf16.gmra.mxu0 %v337
        %v567 = vpop.f32.mrf.mxu0
        %v568 = vadd.f32 %v554, %v567
        %v569 = vpop.f32.mrf.mxu0
        %v570 = vadd.f32 %v556, %v569
        %571 = vdwg.mxu0
        %v572 = vpack.c.bf16 %v568, %v568
        %v573 = vpack.c.bf16 %v570, %v570
        %574 = vst [vmem:[%s269] sm:$0xf] %v572
        %575 = vst [vmem:[%s269 + $0x4] sm:$0xf] %v573
        %v576 = vld [vmem:[%s4] sm:$0x1]
        %v577 = vadd.f32 %v568, %v570
        %v578 = vrot.slane %v577, 4
        %v579 = vadd.f32 %v577, %v578
        %v580 = vrot.slane %v579, 2
        %v581 = vadd.f32 %v579, %v580
        %v582 = vrot.slane %v581, 1
        %v583 = vadd.f32 %v581, %v582
        %v584 = vadd.f32 %v576, %v583
        %585 = vst [vmem:[%s4] sm:$0x1] %v584
        %v586 = vld [vmem:[%s5] sm:$0x1]
        %v587 = vmul.f32 %v568, %v568
        %v588 = vmul.f32 %v570, %v570
        %v589 = vadd.f32 %v587, %v588
        %v590 = vrot.slane %v589, 4
        %v591 = vadd.f32 %v589, %v590
        %v592 = vrot.slane %v591, 2
        %v593 = vadd.f32 %v591, %v592
        %v594 = vrot.slane %v593, 1
        %v595 = vadd.f32 %v593, %v594
        %v596 = vadd.f32 %v586, %v595
        %597 = vst [vmem:[%s5] sm:$0x1] %v596
        %s598 = smul.u32 2, %s17
        %p599 = scmp.lt.s32.totalorder %s598, 3
        %s600 = scalar_select %p599, %s598, 3
        %s601 = smul.addr %s600, 4
        %s602 = scalar_lea.vmem %s3, %s601
        // Predicated region
        $region78: #{residual_block_pallas.5} parent=68 // pred_check
          %p603 = pneg %p103
        $region79: #{residual_block_pallas.5} parent=68 // pred_check_branch
          %605 = sbr.rel (%p603) target = $region81
        $region80: #{residual_block_pallas.5} parent=68 // pred_region
          %s606 = smul.u32 2, %s17
        $region81: #{residual_block_pallas.5} parent=68 // pred_fallthru
          _
        // Predicated region
        $region82: #{residual_block_pallas.5} parent=68 // pred_check
          %p607 = pneg %p124
        $region83: #{residual_block_pallas.5} parent=68 // pred_check_branch
          %609 = sbr.rel (%p607) target = $region85
        $region84: #{residual_block_pallas.5} parent=68 // pred_region
          _
        $region85: #{residual_block_pallas.5} parent=68 // pred_fallthru
          _
        // Predicated region
        $region86: #{residual_block_pallas.5} parent=68 // pred_check
          %p610 = pneg %p145
        $region87: #{residual_block_pallas.5} parent=68 // pred_check_branch
          %612 = sbr.rel (%p610) target = $region89
        $region88: #{residual_block_pallas.5} parent=68 // pred_region
          _
        $region89: #{residual_block_pallas.5} parent=68 // pred_fallthru
          _
        // Predicated region
        $region90: #{residual_block_pallas.5} parent=68 // pred_check
          %p613 = pneg %p124
        $region91: #{residual_block_pallas.5} parent=68 // pred_check_branch
          %615 = sbr.rel (%p613) target = $region93
        $region92: #{residual_block_pallas.5} parent=68 // pred_region
          _
        $region93: #{residual_block_pallas.5} parent=68 // pred_fallthru
          _
        // Predicated region
        $region94: #{residual_block_pallas.5} parent=68 // pred_check
          %p616 = pneg %p145
        $region95: #{residual_block_pallas.5} parent=68 // pred_check_branch
          %618 = sbr.rel (%p616) target = $region97
        $region96: #{residual_block_pallas.5} parent=68 // pred_region
          _
        $region97: #{residual_block_pallas.5} parent=68 // pred_fallthru
          _
      $region69: #{residual_block_pallas.5} parent=5 // pred_fallthru
        _
      %p619 = scmp.le.s32.totalorder 2, %s12
      // Predicated region
      $region98: #{residual_block_pallas.5} parent=5 // pred_check
        %p620 = pneg %p619
      $region99: #{residual_block_pallas.5} parent=5 // pred_check_branch
        %622 = sbr.rel (%p620) target = $region101
      $region100: #{residual_block_pallas.5} parent=5 // pred_region
        %s623 = ssub.s32 %s12, 2
        // Predicated region
        $region102: #{residual_block_pallas.5} parent=100 // pred_check
          %p624 = pneg %p109
        $region103: #{residual_block_pallas.5} parent=100 // pred_check_branch
          %626 = sbr.rel (%p624) target = $region105
        $region104: #{residual_block_pallas.5} parent=100 // pred_region
          %s627 = smul.u32 2, %s18
          %p628 = scmp.lt.s32.totalorder %s627, 3
          %s629 = scalar_select %p628, %s627, 3
          %s630 = smul.addr %s629, 4
          %s631 = scalar_lea.vmem %s3, %s630
        $region105: #{residual_block_pallas.5} parent=100 // pred_fallthru
          _
      $region101: #{residual_block_pallas.5} parent=5 // pred_fallthru
        _
    $region6: #{residual_block_pallas.5} parent=1 // loop_footer
      %s16 = sadd.s32 1, %s12
    $region7: #{residual_block_pallas.5} parent=1 // loop_footer_branch
      %11 = sbr.rel target = $region3
    $region8: #{residual_block_pallas.5} parent=1 // loop_exit
      _

// kernel: residual_block_pallas.6
$region0: #{residual_block_pallas.6}
  #allocation0 [shape = 'u32[]', space=smem, size = 0x4, offset = 0x4, fixed_abs, tag = 'smem constant byte address 0x4 - core index']
  #allocation1 [shape = 'u32[72,128]{1,0:T(1,128)}', space=vmem, size = 0x9000, scoped, tag = 'internal scratch']
  %s0 = inlined_call_operand.vmem [shape: bf16[32,128], index: 0, kind: input, shape index: {}]
  %s1 = inlined_call_operand.vmem [shape: f32[2,128], index: 1, kind: input, shape index: {}]
  %s2 = inlined_call_operand.vmem [shape: bf16[128,128], index: 2, kind: input, shape index: {}]
  %s3 = inlined_call_operand.vmem [shape: bf16[32,128], index: 3, kind: output, shape index: {0}]
  %s4 = inlined_call_operand.vmem [shape: f32[1,128], index: 4, kind: output, shape index: {1}]
  %s5 = inlined_call_operand.vmem [shape: f32[1,128], index: 5, kind: output, shape index: {2}]
  %6 = xla_tuple %s3, %s4, %s5
  %s7 = sld [smem:[#allocation0]]
  $region65: #{residual_block_pallas.6} parent=0
    _
  %s9 = ssub.s32 1, %s7
  %s10 = scalar_select 0, %s9, %s7
  loop: start=0, step=1, limit=4
  $region2: #{residual_block_pallas.6} parent=0 // loop_pre_header
    _
  $region3: #{residual_block_pallas.6} parent=0 // loop_header
    %s12 = sphi 0, %s16
    %p13 = scmp.ge.s32.totalorder %s12, 4
    %s22 = sphi 0, %s24
    %s25 = sphi 0, %s22
    %s26 = sphi 0, %s25
    %s42 = sphi 0, %s26
    %s46 = sphi 0, %s46
    %s48 = sphi 0, %s46
    %s49 = sphi 0, %s48
    %s63 = sphi 0, %s49
    %s67 = sphi 0, %s67
    %s69 = sphi 0, %s67
    %s70 = sphi 0, %s69
    %s84 = sphi 0, %s70
    %s90 = sphi 0, %s92
    %s93 = sphi 0, %s90
    %s94 = sphi 0, %s93
    %s110 = sphi 0, %s94
    %s114 = sphi 0, %s114
    %s116 = sphi 0, %s114
    %s117 = sphi 0, %s116
    %s131 = sphi 0, %s117
    %s135 = sphi 0, %s135
    %s137 = sphi 0, %s135
    %s138 = sphi 0, %s137
    %s152 = sphi 0, %s138
  $region4: #{residual_block_pallas.6} parent=0 // loop_header_branch
    %15 = sbr.rel (%p13) target = $region8
  $region5: #{residual_block_pallas.6} parent=0 // loop_body
    %s17 = ssub.s32 %s12, 1
    %s18 = ssub.s32 %s12, 2
    %s19 = sadd.s32 %s12, 1
    %s20 = ssub.s32 %s12, %s19
    %p21 = scmp.eq.s32.totalorder %s20, 0
    %s23 = sadd.s32 %s22, 1
    %s24 = scalar_select %p21, %s22, %s23
    %p27 = pneg %p21
    %p28 = scmp.eq.s32.totalorder %s12, 1
    %p29 = por %p27, %p28
    %p30 = scmp.ne.s32.totalorder %s22, %s25
    %p31 = scmp.eq.s32.totalorder %s12, 0
    %p32 = por %p30, %p31
    %p33 = scmp.ne.s32.totalorder %s22, %s25
    %p34 = scmp.eq.s32.totalorder %s17, 1
    %p35 = por %p33, %p34
    %p36 = scmp.ne.s32.totalorder %s25, %s26
    %p37 = scmp.eq.s32.totalorder %s17, 0
    %p38 = por %p36, %p37
    %p39 = scmp.ne.s32.totalorder %s25, %s26
    %p40 = scmp.eq.s32.totalorder %s18, 1
    %p41 = por %p39, %p40
    %p43 = scmp.ne.s32.totalorder %s26, %s42
    %p44 = scmp.eq.s32.totalorder %s18, 0
    %p45 = por %p43, %p44
    %s47 = sadd.s32 %s46, 1
    %p50 = scmp.eq.s32.totalorder %s12, 1
    %p51 = scmp.ne.s32.totalorder %s46, %s48
    %p52 = scmp.eq.s32.totalorder %s12, 0
    %p53 = por %p51, %p52
    %p54 = scmp.ne.s32.totalorder %s46, %s48
    %p55 = scmp.eq.s32.totalorder %s17, 1
    %p56 = por %p54, %p55
    %p57 = scmp.ne.s32.totalorder %s48, %s49
    %p58 = scmp.eq.s32.totalorder %s17, 0
    %p59 = por %p57, %p58
    %p60 = scmp.ne.s32.totalorder %s48, %s49
    %p61 = scmp.eq.s32.totalorder %s18, 1
    %p62 = por %p60, %p61
    %p64 = scmp.ne.s32.totalorder %s49, %s63
    %p65 = scmp.eq.s32.totalorder %s18, 0
    %p66 = por %p64, %p65
    %s68 = sadd.s32 %s67, 1
    %p71 = scmp.eq.s32.totalorder %s12, 1
    %p72 = scmp.ne.s32.totalorder %s67, %s69
    %p73 = scmp.eq.s32.totalorder %s12, 0
    %p74 = por %p72, %p73
    %p75 = scmp.ne.s32.totalorder %s67, %s69
    %p76 = scmp.eq.s32.totalorder %s17, 1
    %p77 = por %p75, %p76
    %p78 = scmp.ne.s32.totalorder %s69, %s70
    %p79 = scmp.eq.s32.totalorder %s17, 0
    %p80 = por %p78, %p79
    %p81 = scmp.ne.s32.totalorder %s69, %s70
    %p82 = scmp.eq.s32.totalorder %s18, 1
    %p83 = por %p81, %p82
    %p85 = scmp.ne.s32.totalorder %s70, %s84
    %p86 = scmp.eq.s32.totalorder %s18, 0
    %p87 = por %p85, %p86
    %s88 = ssub.s32 %s12, %s19
    %p89 = scmp.eq.s32.totalorder %s88, 0
    %s91 = sadd.s32 %s90, 1
    %s92 = scalar_select %p89, %s90, %s91
    %p95 = pneg %p89
    %p96 = scmp.eq.s32.totalorder %s12, 1
    %p97 = por %p95, %p96
    %p98 = scmp.ne.s32.totalorder %s90, %s93
    %p99 = scmp.eq.s32.totalorder %s12, 0
    %p100 = por %p98, %p99
    %p101 = scmp.ne.s32.totalorder %s90, %s93
    %p102 = scmp.eq.s32.totalorder %s17, 1
    %p103 = por %p101, %p102
    %p104 = scmp.ne.s32.totalorder %s93, %s94
    %p105 = scmp.eq.s32.totalorder %s17, 0
    %p106 = por %p104, %p105
    %p107 = scmp.ne.s32.totalorder %s93, %s94
    %p108 = scmp.eq.s32.totalorder %s18, 1
    %p109 = por %p107, %p108
    %p111 = scmp.ne.s32.totalorder %s94, %s110
    %p112 = scmp.eq.s32.totalorder %s18, 0
    %p113 = por %p111, %p112
    %s115 = sadd.s32 %s114, 1
    %p118 = scmp.eq.s32.totalorder %s12, 1
    %p119 = scmp.ne.s32.totalorder %s114, %s116
    %p120 = scmp.eq.s32.totalorder %s12, 0
    %p121 = por %p119, %p120
    %p122 = scmp.ne.s32.totalorder %s114, %s116
    %p123 = scmp.eq.s32.totalorder %s17, 1
    %p124 = por %p122, %p123
    %p125 = scmp.ne.s32.totalorder %s116, %s117
    %p126 = scmp.eq.s32.totalorder %s17, 0
    %p127 = por %p125, %p126
    %p128 = scmp.ne.s32.totalorder %s116, %s117
    %p129 = scmp.eq.s32.totalorder %s18, 1
    %p130 = por %p128, %p129
    %p132 = scmp.ne.s32.totalorder %s117, %s131
    %p133 = scmp.eq.s32.totalorder %s18, 0
    %p134 = por %p132, %p133
    %s136 = sadd.s32 %s135, 1
    %p139 = scmp.eq.s32.totalorder %s12, 1
    %p140 = scmp.ne.s32.totalorder %s135, %s137
    %p141 = scmp.eq.s32.totalorder %s12, 0
    %p142 = por %p140, %p141
    %p143 = scmp.ne.s32.totalorder %s135, %s137
    %p144 = scmp.eq.s32.totalorder %s17, 1
    %p145 = por %p143, %p144
    %p146 = scmp.ne.s32.totalorder %s137, %s138
    %p147 = scmp.eq.s32.totalorder %s17, 0
    %p148 = por %p146, %p147
    %p149 = scmp.ne.s32.totalorder %s137, %s138
    %p150 = scmp.eq.s32.totalorder %s18, 1
    %p151 = por %p149, %p150
    %p153 = scmp.ne.s32.totalorder %s138, %s152
    %p154 = scmp.eq.s32.totalorder %s18, 0
    %p155 = por %p153, %p154
    %p156 = scmp.le.s32.totalorder 1, %s12
    %p157 = scmp.lt.s32.totalorder %s12, 3
    %p158 = pnand %p156, %p157
    %p159 = pneg %p158
    // Predicated region
    $region9: #{residual_block_pallas.6} parent=5 // pred_check
      _
    $region10: #{residual_block_pallas.6} parent=5 // pred_check_branch
      %161 = sbr.rel (%p158) target = $region12
    $region11: #{residual_block_pallas.6} parent=5 // pred_region
      %s162 = ssub.s32 %s12, 1
      // Predicated region
      $region13: #{residual_block_pallas.6} parent=11 // pred_check
        %p163 = pneg %p59
      $region14: #{residual_block_pallas.6} parent=11 // pred_check_branch
        %165 = sbr.rel (%p163) target = $region16
      $region15: #{residual_block_pallas.6} parent=11 // pred_region
        _
      $region16: #{residual_block_pallas.6} parent=11 // pred_fallthru
        _
      // Predicated region
      $region17: #{residual_block_pallas.6} parent=11 // pred_check
        %p166 = pneg %p80
      $region18: #{residual_block_pallas.6} parent=11 // pred_check_branch
        %168 = sbr.rel (%p166) target = $region20
      $region19: #{residual_block_pallas.6} parent=11 // pred_region
        _
      $region20: #{residual_block_pallas.6} parent=11 // pred_fallthru
        _
    $region12: #{residual_block_pallas.6} parent=5 // pred_fallthru
      _
    %p169 = scmp.lt.s32.totalorder %s12, 2
    // Predicated region
    $region21: #{residual_block_pallas.6} parent=5 // pred_check
      %p170 = pneg %p169
    $region22: #{residual_block_pallas.6} parent=5 // pred_check_branch
      %172 = sbr.rel (%p170) target = $region24
    $region23: #{residual_block_pallas.6} parent=5 // pred_region
      // Predicated region
      $region25: #{residual_block_pallas.6} parent=23 // pred_check
        %p173 = pneg %p32
      $region26: #{residual_block_pallas.6} parent=23 // pred_check_branch
        %175 = sbr.rel (%p173) target = $region28
      $region27: #{residual_block_pallas.6} parent=23 // pred_region
        %s176 = smul.u32 2, %s12
        %p177 = scmp.lt.s32.totalorder %s176, 3
        %s178 = scalar_select %p177, %s176, 3
        %s179 = smul.addr %s178, 4
        %s180 = scalar_lea.vmem %s0, %s179
        %s181 = smul.u32 2, %s12
      $region28: #{residual_block_pallas.6} parent=23 // pred_fallthru
        _
    $region24: #{residual_block_pallas.6} parent=5 // pred_fallthru
      _
    %p182 = scmp.le.s32.totalorder 1, %s12
    %p183 = scmp.lt.s32.totalorder %s12, 3
    %p184 = pnand %p182, %p183
    %p185 = pneg %p184
    // Predicated region
    $region29: #{residual_block_pallas.6} parent=5 // pred_check
      _
    $region30: #{residual_block_pallas.6} parent=5 // pred_check_branch
      %187 = sbr.rel (%p184) target = $region32
    $region31: #{residual_block_pallas.6} parent=5 // pred_region
      %s188 = ssub.s32 %s12, 1
      %s189 = smul.u32 2, %s17
      %p190 = scmp.lt.s32.totalorder %s189, 3
      %s191 = scalar_select %p190, %s189, 3
      %s192 = smul.addr %s191, 4
      %s193 = scalar_lea.vmem %s0, %s192
      %p194 = pneg %p38
      %p195 = pneg %p35
      %p196 = pneg %p59
      %p197 = pneg %p56
      %p198 = pneg %p80
      %p199 = pneg %p77
      %p200 = pneg %p106
      %p201 = pneg %p103
      %s202 = smul.u32 2, %s17
      %p203 = scmp.lt.s32.totalorder %s202, 3
      %s204 = scalar_select %p203, %s202, 3
      %s205 = smul.addr %s204, 4
      %s206 = scalar_lea.vmem %s3, %s205
      %p207 = pneg %p127
      %p208 = pneg %p124
      %p209 = pneg %p148
      %p210 = pneg %p145
      %s211 = smul.u32 2, %s17
      %p212 = scmp.lt.s32.totalorder %s211, 3
      %s213 = scalar_select %p212, %s211, 3
      %s214 = smul.addr %s213, 4
      %s215 = scalar_lea.vmem %s0, %s214
      %s216 = smul.u32 2, %s17
      %s217 = smul.u32 2, %s17
      %p218 = scmp.lt.s32.totalorder %s217, 3
      %s219 = scalar_select %p218, %s217, 3
      %s220 = smul.addr %s219, 4
      %s221 = scalar_lea.vmem %s3, %s220
      %s222 = smul.u32 2, %s17
      %p223 = scmp.eq.s32.totalorder %s17, 0
      // Predicated region
      $region33: #{residual_block_pallas.6} parent=31 // pred_check
        %p224 = pneg %p223
      $region34: #{residual_block_pallas.6} parent=31 // pred_check_branch
        %226 = sbr.rel (%p224) target = $region36
      $region35: #{residual_block_pallas.6} parent=31 // pred_region
        %227 = vst [vmem:[%s4] sm:$0x1] 0.0
        %228 = vst [vmem:[%s5] sm:$0x1] 0.0
      $region36: #{residual_block_pallas.6} parent=31 // pred_fallthru
        _
      %v229 = vld [vmem:[%s1] sm:$0x3]
      %v230 = vld [vmem:[%s215] sm:$0xf]
      %v231 = vld [vmem:[%s215 + $0x4] sm:$0xf]
      %v232 = vunpack.c.l.bf16 %v230
      %v233 = vunpack.c.l.bf16 %v231
      %v234 = vperm.slane %v229, 0
      %v235 = vmul.f32 %v232, %v234
      %v236 = vmul.f32 %v233, %v234
      %v237 = vperm.slane %v229, 1
      %v238 = vadd.f32 %v235, %v237
      %v239 = vadd.f32 %v236, %v237
      %v240 = vmax.f32 %v238, 0.0
      %v241 = vmax.f32 %v239, 0.0
      %v242 = vpack.c.bf16 %v241, %v240
      %v243 = vld [vmem:[%s2] sm:$0xf]
      %v244 = vld [vmem:[%s2 + $0x4] sm:$0xf]
      %v245 = vld [vmem:[%s2 + $0x8] sm:$0xf]
      %v246 = vld [vmem:[%s2 + $0xc] sm:$0xf]
      %v247 = vld [vmem:[%s2 + $0x10] sm:$0xf]
      %v248 = vld [vmem:[%s2 + $0x14] sm:$0xf]
      %v249 = vld [vmem:[%s2 + $0x18] sm:$0xf]
      %v250 = vld [vmem:[%s2 + $0x1c] sm:$0xf]
      %v251 = vld [vmem:[%s2 + $0x20] sm:$0xf]
      %v252 = vld [vmem:[%s2 + $0x24] sm:$0xf]
      %v253 = vld [vmem:[%s2 + $0x28] sm:$0xf]
      %v254 = vld [vmem:[%s2 + $0x2c] sm:$0xf]
      %v255 = vld [vmem:[%s2 + $0x30] sm:$0xf]
      %v256 = vld [vmem:[%s2 + $0x34] sm:$0xf]
      %v257 = vld [vmem:[%s2 + $0x38] sm:$0xf]
      %v258 = vld [vmem:[%s2 + $0x3c] sm:$0xf]
      %v275 = vunpack.c.l.b16 %v243
      %v276 = vunpack.c.l.b16 %v244
      %v277 = vunpack.c.l.b16 %v245
      %v278 = vunpack.c.l.b16 %v246
      %v279 = vunpack.c.l.b16 %v247
      %v280 = vunpack.c.l.b16 %v248
      %v281 = vunpack.c.l.b16 %v249
      %v282 = vunpack.c.l.b16 %v250
      %v283 = vunpack.c.l.b16 %v251
      %v284 = vunpack.c.l.b16 %v252
      %v285 = vunpack.c.l.b16 %v253
      %v286 = vunpack.c.l.b16 %v254
      %v287 = vunpack.c.l.b16 %v255
      %v288 = vunpack.c.l.b16 %v256
      %v289 = vunpack.c.l.b16 %v257
      %v290 = vunpack.c.l.b16 %v258
      %v291 = vpack.c.b16 %v276, %v275
      %v292 = vpack.c.b16 %v278, %v277
      %v293 = vpack.c.b16 %v280, %v279
      %v294 = vpack.c.b16 %v282, %v281
      %v295 = vpack.c.b16 %v284, %v283
      %v296 = vpack.c.b16 %v286, %v285
      %v297 = vpack.c.b16 %v288, %v287
      %v298 = vpack.c.b16 %v290, %v289
      %307 = vmatpush.bf16.msra.mxu0 %v298
      %308 = vmatpush.bf16.msra.mxu0 %v297
      %309 = vmatpush.bf16.msra.mxu0 %v296
      %310 = vmatpush.bf16.msra.mxu0 %v295
      %311 = vmatpush.bf16.msra.mxu0 %v294
      %312 = vmatpush.bf16.msra.mxu0 %v293
      %313 = vmatpush.bf16.msra.mxu0 %v292
      %314 = vmatpush.bf16.msra.mxu0 %v291
      %315 = vmatmul.bf16.gmra.mxu0 %v242
      %v316 = vpop.f32.mrf.mxu0
      %v317 = vadd.f32 0.0, %v316
      %v318 = vpop.f32.mrf.mxu0
      %v319 = vadd.f32 0.0, %v318
      %320 = vdwg.mxu0
      %v321 = vpack.c.bf16 %v317, %v317
      %v322 = vpack.c.bf16 %v319, %v319
      %323 = vst [vmem:[%s221] sm:$0xf] %v321
      %324 = vst [vmem:[%s221 + $0x4] sm:$0xf] %v322
      %v325 = vld [vmem:[%s4] sm:$0x1]
      %v326 = vadd.f32 %v317, %v319
      %v327 = vrot.slane %v326, 4
      %v328 = vadd.f32 %v326, %v327
      %v329 = vrot.slane %v328, 2
      %v330 = vadd.f32 %v328, %v329
      %v331 = vrot.slane %v330, 1
      %v332 = vadd.f32 %v330, %v331
      %v333 = vadd.f32 %v325, %v332
      %334 = vst [vmem:[%s4] sm:$0x1] %v333
      %v335 = vld [vmem:[%s5] sm:$0x1]
      %v336 = vmul.f32 %v317, %v317
      %v337 = vmul.f32 %v319, %v319
      %v338 = vadd.f32 %v336, %v337
      %v339 = vrot.slane %v338, 4
      %v340 = vadd.f32 %v338, %v339
      %v341 = vrot.slane %v340, 2
      %v342 = vadd.f32 %v340, %v341
      %v343 = vrot.slane %v342, 1
      %v344 = vadd.f32 %v342, %v343
      %v345 = vadd.f32 %v335, %v344
      %346 = vst [vmem:[%s5] sm:$0x1] %v345
      %s347 = smul.u32 2, %s17
      %p348 = scmp.lt.s32.totalorder %s347, 3
      %s349 = scalar_select %p348, %s347, 3
      %s350 = smul.addr %s349, 4
      %s351 = scalar_lea.vmem %s3, %s350
      // Predicated region
      $region37: #{residual_block_pallas.6} parent=31 // pred_check
        %p352 = pneg %p103
      $region38: #{residual_block_pallas.6} parent=31 // pred_check_branch
        %354 = sbr.rel (%p352) target = $region40
      $region39: #{residual_block_pallas.6} parent=31 // pred_region
        %s355 = smul.u32 2, %s17
      $region40: #{residual_block_pallas.6} parent=31 // pred_fallthru
        _
      // Predicated region
      $region41: #{residual_block_pallas.6} parent=31 // pred_check
        %p356 = pneg %p124
      $region42: #{residual_block_pallas.6} parent=31 // pred_check_branch
        %358 = sbr.rel (%p356) target = $region44
      $region43: #{residual_block_pallas.6} parent=31 // pred_region
        _
      $region44: #{residual_block_pallas.6} parent=31 // pred_fallthru
        _
      // Predicated region
      $region45: #{residual_block_pallas.6} parent=31 // pred_check
        %p359 = pneg %p145
      $region46: #{residual_block_pallas.6} parent=31 // pred_check_branch
        %361 = sbr.rel (%p359) target = $region48
      $region47: #{residual_block_pallas.6} parent=31 // pred_region
        _
      $region48: #{residual_block_pallas.6} parent=31 // pred_fallthru
        _
      // Predicated region
      $region49: #{residual_block_pallas.6} parent=31 // pred_check
        %p362 = pneg %p124
      $region50: #{residual_block_pallas.6} parent=31 // pred_check_branch
        %364 = sbr.rel (%p362) target = $region52
      $region51: #{residual_block_pallas.6} parent=31 // pred_region
        _
      $region52: #{residual_block_pallas.6} parent=31 // pred_fallthru
        _
      // Predicated region
      $region53: #{residual_block_pallas.6} parent=31 // pred_check
        %p365 = pneg %p145
      $region54: #{residual_block_pallas.6} parent=31 // pred_check_branch
        %367 = sbr.rel (%p365) target = $region56
      $region55: #{residual_block_pallas.6} parent=31 // pred_region
        _
      $region56: #{residual_block_pallas.6} parent=31 // pred_fallthru
        _
    $region32: #{residual_block_pallas.6} parent=5 // pred_fallthru
      _
    %p368 = scmp.le.s32.totalorder 2, %s12
    // Predicated region
    $region57: #{residual_block_pallas.6} parent=5 // pred_check
      %p369 = pneg %p368
    $region58: #{residual_block_pallas.6} parent=5 // pred_check_branch
      %371 = sbr.rel (%p369) target = $region60
    $region59: #{residual_block_pallas.6} parent=5 // pred_region
      %s372 = ssub.s32 %s12, 2
      // Predicated region
      $region61: #{residual_block_pallas.6} parent=59 // pred_check
        %p373 = pneg %p109
      $region62: #{residual_block_pallas.6} parent=59 // pred_check_branch
        %375 = sbr.rel (%p373) target = $region64
      $region63: #{residual_block_pallas.6} parent=59 // pred_region
        %s376 = smul.u32 2, %s18
        %p377 = scmp.lt.s32.totalorder %s376, 3
        %s378 = scalar_select %p377, %s376, 3
        %s379 = smul.addr %s378, 4
        %s380 = scalar_lea.vmem %s3, %s379
      $region64: #{residual_block_pallas.6} parent=59 // pred_fallthru
        _
    $region60: #{residual_block_pallas.6} parent=5 // pred_fallthru
      _
  $region6: #{residual_block_pallas.6} parent=0 // loop_footer
    %s16 = sadd.s32 1, %s12
  $region7: #{residual_block_pallas.6} parent=0 // loop_footer_branch
    %11 = sbr.rel target = $region3
  $region8: #{residual_block_pallas.6} parent=0 // loop_exit
    _

// kernel: residual_block_pallas.7
$region0: #{residual_block_pallas.7}
  #allocation0 [shape = 'u32[]', space=smem, size = 0x4, offset = 0x4, fixed_abs, tag = 'smem constant byte address 0x4 - core index']
  #allocation1 [shape = 'u32[72,128]{1,0:T(1,128)}', space=vmem, size = 0x9000, scoped, tag = 'internal scratch']
  %s0 = inlined_call_operand.vmem [shape: bf16[32,128], index: 0, kind: input, shape index: {}]
  %s1 = inlined_call_operand.vmem [shape: bf16[32,256], index: 1, kind: input, shape index: {}]
  %s2 = inlined_call_operand.vmem [shape: f32[4,128], index: 2, kind: input, shape index: {}]
  %s3 = inlined_call_operand.vmem [shape: f32[32,128], index: 3, kind: output, shape index: {}]
  %s4 = sld [smem:[#allocation0]]
  $region86: #{residual_block_pallas.7} parent=0
    _
  %s6 = ssub.s32 1, %s4
  %s7 = scalar_select 0, %s6, %s4
  $region1: #{residual_block_pallas.7} parent=0
    #allocation2 [shape = 'u8[8192]{0}', space=vmem, size = 0x2000, scoped, tag = 'input window, operand 1']
    loop: start=0, step=1, limit=4
    $region2: #{residual_block_pallas.7} parent=1 // loop_pre_header
      _
    $region3: #{residual_block_pallas.7} parent=1 // loop_header
      %s9 = sphi 0, %s13
      %p10 = scmp.ge.s32.totalorder %s9, 4
      %s19 = sphi 0, %s21
      %s22 = sphi 0, %s19
      %s23 = sphi 0, %s22
      %s39 = sphi 0, %s23
      %s45 = sphi 0, %s47
      %s48 = sphi 0, %s45
      %s49 = sphi 0, %s48
      %s65 = sphi 0, %s49
      %s69 = sphi 0, %s69
      %s71 = sphi 0, %s69
      %s72 = sphi 0, %s71
      %s86 = sphi 0, %s72
      %s92 = sphi 0, %s94
      %s95 = sphi 0, %s92
      %s96 = sphi 0, %s95
      %s112 = sphi 0, %s96
    $region4: #{residual_block_pallas.7} parent=1 // loop_header_branch
      %12 = sbr.rel (%p10) target = $region8
    $region5: #{residual_block_pallas.7} parent=1 // loop_body
      %s14 = ssub.s32 %s9, 1
      %s15 = ssub.s32 %s9, 2
      %s16 = sadd.s32 %s9, 1
      %s17 = ssub.s32 %s9, %s16
      %p18 = scmp.eq.s32.totalorder %s17, 0
      %s20 = sadd.s32 %s19, 1
      %s21 = scalar_select %p18, %s19, %s20
      %p24 = pneg %p18
      %p25 = scmp.eq.s32.totalorder %s9, 1
      %p26 = por %p24, %p25
      %p27 = scmp.ne.s32.totalorder %s19, %s22
      %p28 = scmp.eq.s32.totalorder %s9, 0
      %p29 = por %p27, %p28
      %p30 = scmp.ne.s32.totalorder %s19, %s22
      %p31 = scmp.eq.s32.totalorder %s14, 1
      %p32 = por %p30, %p31
      %p33 = scmp.ne.s32.totalorder %s22, %s23
      %p34 = scmp.eq.s32.totalorder %s14, 0
      %p35 = por %p33, %p34
      %p36 = scmp.ne.s32.totalorder %s22, %s23
      %p37 = scmp.eq.s32.totalorder %s15, 1
      %p38 = por %p36, %p37
      %p40 = scmp.ne.s32.totalorder %s23, %s39
      %p41 = scmp.eq.s32.totalorder %s15, 0
      %p42 = por %p40, %p41
      %s43 = ssub.s32 %s9, %s16
      %p44 = scmp.eq.s32.totalorder %s43, 0
      %s46 = sadd.s32 %s45, 1
      %s47 = scalar_select %p44, %s45, %s46
      %p50 = pneg %p44
      %p51 = scmp.eq.s32.totalorder %s9, 1
      %p52 = por %p50, %p51
      %p53 = scmp.ne.s32.totalorder %s45, %s48
      %p54 = scmp.eq.s32.totalorder %s9, 0
      %p55 = por %p53, %p54
      %p56 = scmp.ne.s32.totalorder %s45, %s48
      %p57 = scmp.eq.s32.totalorder %s14, 1
      %p58 = por %p56, %p57
      %p59 = scmp.ne.s32.totalorder %s48, %s49
      %p60 = scmp.eq.s32.totalorder %s14, 0
      %p61 = por %p59, %p60
      %p62 = scmp.ne.s32.totalorder %s48, %s49
      %p63 = scmp.eq.s32.totalorder %s15, 1
      %p64 = por %p62, %p63
      %p66 = scmp.ne.s32.totalorder %s49, %s65
      %p67 = scmp.eq.s32.totalorder %s15, 0
      %p68 = por %p66, %p67
      %s70 = sadd.s32 %s69, 1
      %p73 = scmp.eq.s32.totalorder %s9, 1
      %p74 = scmp.ne.s32.totalorder %s69, %s71
      %p75 = scmp.eq.s32.totalorder %s9, 0
      %p76 = por %p74, %p75
      %p77 = scmp.ne.s32.totalorder %s69, %s71
      %p78 = scmp.eq.s32.totalorder %s14, 1
      %p79 = por %p77, %p78
      %p80 = scmp.ne.s32.totalorder %s71, %s72
      %p81 = scmp.eq.s32.totalorder %s14, 0
      %p82 = por %p80, %p81
      %p83 = scmp.ne.s32.totalorder %s71, %s72
      %p84 = scmp.eq.s32.totalorder %s15, 1
      %p85 = por %p83, %p84
      %p87 = scmp.ne.s32.totalorder %s72, %s86
      %p88 = scmp.eq.s32.totalorder %s15, 0
      %p89 = por %p87, %p88
      %s90 = ssub.s32 %s9, %s16
      %p91 = scmp.eq.s32.totalorder %s90, 0
      %s93 = sadd.s32 %s92, 1
      %s94 = scalar_select %p91, %s92, %s93
      %p97 = pneg %p91
      %p98 = scmp.eq.s32.totalorder %s9, 1
      %p99 = por %p97, %p98
      %p100 = scmp.ne.s32.totalorder %s92, %s95
      %p101 = scmp.eq.s32.totalorder %s9, 0
      %p102 = por %p100, %p101
      %p103 = scmp.ne.s32.totalorder %s92, %s95
      %p104 = scmp.eq.s32.totalorder %s14, 1
      %p105 = por %p103, %p104
      %p106 = scmp.ne.s32.totalorder %s95, %s96
      %p107 = scmp.eq.s32.totalorder %s14, 0
      %p108 = por %p106, %p107
      %p109 = scmp.ne.s32.totalorder %s95, %s96
      %p110 = scmp.eq.s32.totalorder %s15, 1
      %p111 = por %p109, %p110
      %p113 = scmp.ne.s32.totalorder %s96, %s112
      %p114 = scmp.eq.s32.totalorder %s15, 0
      %p115 = por %p113, %p114
      %p116 = scmp.le.s32.totalorder 1, %s9
      %p117 = scmp.lt.s32.totalorder %s9, 3
      %p118 = pnand %p116, %p117
      %p119 = pneg %p118
      // Predicated region
      $region9: #{residual_block_pallas.7} parent=5 // pred_check
        _
      $region10: #{residual_block_pallas.7} parent=5 // pred_check_branch
        %121 = sbr.rel (%p118) target = $region12
      $region11: #{residual_block_pallas.7} parent=5 // pred_region
        %s122 = ssub.s32 %s9, 1
        // Predicated region
        $region13: #{residual_block_pallas.7} parent=11 // pred_check
          %p123 = pneg %p82
        $region14: #{residual_block_pallas.7} parent=11 // pred_check_branch
          %125 = sbr.rel (%p123) target = $region16
        $region15: #{residual_block_pallas.7} parent=11 // pred_region
          _
        $region16: #{residual_block_pallas.7} parent=11 // pred_fallthru
          _
      $region12: #{residual_block_pallas.7} parent=5 // pred_fallthru
        _
      %p126 = scmp.lt.s32.totalorder %s9, 2
      // Predicated region
      $region17: #{residual_block_pallas.7} parent=5 // pred_check
        %p127 = pneg %p126
      $region18: #{residual_block_pallas.7} parent=5 // pred_check_branch
        %129 = sbr.rel (%p127) target = $region20
      $region19: #{residual_block_pallas.7} parent=5 // pred_region
        // Predicated region
        $region21: #{residual_block_pallas.7} parent=19 // pred_check
          %p130 = pneg %p29
        $region22: #{residual_block_pallas.7} parent=19 // pred_check_branch
          %132 = sbr.rel (%p130) target = $region24
        $region23: #{residual_block_pallas.7} parent=19 // pred_region
          %s133 = smul.u32 2, %s9
          %p134 = scmp.lt.s32.totalorder %s133, 3
          %s135 = scalar_select %p134, %s133, 3
          %s136 = smul.addr %s135, 4
          %s137 = scalar_lea.vmem %s0, %s136
          %s138 = smul.u32 2, %s9
        $region24: #{residual_block_pallas.7} parent=19 // pred_fallthru
          _
        // Predicated region
        $region25: #{residual_block_pallas.7} parent=19 // pred_check
          %p139 = pneg %p55
        $region26: #{residual_block_pallas.7} parent=19 // pred_check_branch
          %141 = sbr.rel (%p139) target = $region28
        $region27: #{residual_block_pallas.7} parent=19 // pred_region
          %s142 = sand.u32 %s45, 1
          %s143 = sand.u32 %s45, 1
          %s144 = smul.addr %s143, 8
          %s145 = scalar_lea.vmem [#allocation2], %s144
          %s146 = smul.u32 2, %s9
          %s147 = smul.addr %s146, 2
          %s148 = sadd.s32 1, %s147
          %s149 = smul.addr %s148, 4
          %s150 = scalar_lea.vmem %s1, %s149
          // Predicated region
          $region29: #{residual_block_pallas.7} parent=27 // pred_check
            _
          $region30: #{residual_block_pallas.7} parent=27 // pred_check_branch
            %152 = sbr.rel (0) target = $region32
          $region31: #{residual_block_pallas.7} parent=27 // pred_region
            // Predicated region
            $region33: #{residual_block_pallas.7} parent=31 // pred_check
              _
            $region34: #{residual_block_pallas.7} parent=31 // pred_check_branch
              %154 = sbr.rel target = $region36
            $region35: #{residual_block_pallas.7} parent=31 // pred_region
              // Predicated region
              $region48: #{residual_block_pallas.7} parent=35 // pred_check
                _
              $region49: #{residual_block_pallas.7} parent=35 // pred_check_branch
                %172 = sbr.rel (0) target = $region51
              $region50: #{residual_block_pallas.7} parent=35 // pred_region
                loop: start=0, step=1, limit=1
                $region52: #{residual_block_pallas.7} parent=50 // loop_pre_header
                  _
                $region53: #{residual_block_pallas.7} parent=50 // loop_header
                  %s174 = sphi 0, %s178
                  %p175 = scmp.ge.s32.totalorder %s174, 1
                  %s179 = sphi %s150, %s150
                  %s180 = sphi %s145, %s145
                $region54: #{residual_block_pallas.7} parent=50 // loop_header_branch
                  %177 = sbr.rel (%p175) target = $region58
                $region55: #{residual_block_pallas.7} parent=50 // loop_body
                  _
                $region56: #{residual_block_pallas.7} parent=50 // loop_footer
                  %s178 = sadd.s32 1, %s174
                $region57: #{residual_block_pallas.7} parent=50 // loop_footer_branch
                  %173 = sbr.rel target = $region53
                $region58: #{residual_block_pallas.7} parent=50 // loop_exit
                  _
                %s182 = ssub.s32 16, 1
                loop: start=0, step=1, limit=1
                $region59: #{residual_block_pallas.7} parent=50 // loop_pre_header
                  _
                $region60: #{residual_block_pallas.7} parent=50 // loop_header
                  %s184 = sphi 0, %s188
                  %p185 = scmp.ge.s32.totalorder %s184, 1
                  %s189 = sphi %s150, %s150
                  %s190 = sphi %s145, %s145
                $region61: #{residual_block_pallas.7} parent=50 // loop_header_branch
                  %187 = sbr.rel (%p185) target = $region65
                $region62: #{residual_block_pallas.7} parent=50 // loop_body
                  %v191 = vld [vmem:[%s189] sm:%s182]
                  %192 = vst [vmem:[%s190] sm:%s182] %v191
                  %v193 = vld [vmem:[%s189 + $0x8] sm:%s182]
                  %194 = vst [vmem:[%s190 + $0x4] sm:%s182] %v193
                $region63: #{residual_block_pallas.7} parent=50 // loop_footer
                  %s188 = sadd.s32 1, %s184
                $region64: #{residual_block_pallas.7} parent=50 // loop_footer_branch
                  %183 = sbr.rel target = $region60
                $region65: #{residual_block_pallas.7} parent=50 // loop_exit
                  _
              $region51: #{residual_block_pallas.7} parent=35 // pred_fallthru
                _
            $region36: #{residual_block_pallas.7} parent=31 // pred_fallthru
              _
            // Predicated region
            $region37: #{residual_block_pallas.7} parent=31 // pred_check
              _
            $region38: #{residual_block_pallas.7} parent=31 // pred_check_branch
              %156 = sbr.rel (0) target = $region40
            $region39: #{residual_block_pallas.7} parent=31 // pred_region
              %s158 = ssub.s32 16, 1
              loop: start=0, step=1, limit=1
              $region41: #{residual_block_pallas.7} parent=39 // loop_pre_header
                _
              $region42: #{residual_block_pallas.7} parent=39 // loop_header
                %s160 = sphi 0, %s164
                %p161 = scmp.ge.s32.totalorder %s160, 1
                %s165 = sphi %s150, %s150
                %s166 = sphi %s145, %s145
              $region43: #{residual_block_pallas.7} parent=39 // loop_header_branch
                %163 = sbr.rel (%p161) target = $region47
              $region44: #{residual_block_pallas.7} parent=39 // loop_body
                %v167 = vld [vmem:[%s165] sm:%s158]
                %168 = vst [vmem:[%s166] sm:%s158] %v167
                %v169 = vld [vmem:[%s165 + $0x8] sm:%s158]
                %170 = vst [vmem:[%s166 + $0x4] sm:%s158] %v169
              $region45: #{residual_block_pallas.7} parent=39 // loop_footer
                %s164 = sadd.s32 1, %s160
              $region46: #{residual_block_pallas.7} parent=39 // loop_footer_branch
                %159 = sbr.rel target = $region42
              $region47: #{residual_block_pallas.7} parent=39 // loop_exit
                _
            $region40: #{residual_block_pallas.7} parent=31 // pred_fallthru
              _
          $region32: #{residual_block_pallas.7} parent=27 // pred_fallthru
            _
          %195 = vnop
        $region28: #{residual_block_pallas.7} parent=19 // pred_fallthru
          _
      $region20: #{residual_block_pallas.7} parent=5 // pred_fallthru
        _
      %p196 = scmp.le.s32.totalorder 1, %s9
      %p197 = scmp.lt.s32.totalorder %s9, 3
      %p198 = pnand %p196, %p197
      %p199 = pneg %p198
      // Predicated region
      $region66: #{residual_block_pallas.7} parent=5 // pred_check
        _
      $region67: #{residual_block_pallas.7} parent=5 // pred_check_branch
        %201 = sbr.rel (%p198) target = $region69
      $region68: #{residual_block_pallas.7} parent=5 // pred_region
        %s202 = ssub.s32 %s9, 1
        %s203 = sand.u32 %s48, 1
        %s204 = sand.u32 %s48, 1
        %s205 = smul.addr %s204, 8
        %s206 = scalar_lea.vmem [#allocation2], %s205
        // Predicated region
        $region70: #{residual_block_pallas.7} parent=68 // pred_check
          %p207 = pneg %p61
        $region71: #{residual_block_pallas.7} parent=68 // pred_check_branch
          %209 = sbr.rel (%p207) target = $region73
        $region72: #{residual_block_pallas.7} parent=68 // pred_region
          _
        $region73: #{residual_block_pallas.7} parent=68 // pred_fallthru
          _
        %s210 = smul.u32 2, %s14
        %p211 = scmp.lt.s32.totalorder %s210, 3
        %s212 = scalar_select %p211, %s210, 3
        %s213 = smul.addr %s212, 4
        %s214 = scalar_lea.vmem %s0, %s213
        %p215 = pneg %p35
        %p216 = pneg %p32
        %s217 = sand.u32 %s48, 1
        %s218 = sand.u32 %s48, 1
        %s219 = smul.addr %s218, 8
        %s220 = scalar_lea.vmem [#allocation2], %s219
        %p221 = pneg %p61
        %p222 = pneg %p58
        %p223 = pneg %p82
        %p224 = pneg %p79
        %p225 = pneg %p108
        %p226 = pneg %p105
        %s227 = smul.u32 2, %s14
        %p228 = scmp.lt.s32.totalorder %s227, 3
        %s229 = scalar_select %p228, %s227, 3
        %s230 = smul.addr %s229, 8
        %s231 = scalar_lea.vmem %s3, %s230
        %s232 = smul.u32 2, %s14
        %p233 = scmp.lt.s32.totalorder %s232, 3
        %s234 = scalar_select %p233, %s232, 3
        %s235 = smul.addr %s234, 4
        %s236 = scalar_lea.vmem %s0, %s235
        %s237 = smul.u32 2, %s14
        %s238 = smul.u32 2, %s14
        %s239 = smul.u32 2, %s14
        %p240 = scmp.lt.s32.totalorder %s239, 3
        %s241 = scalar_select %p240, %s239, 3
        %s242 = smul.addr %s241, 8
        %s243 = scalar_lea.vmem %s3, %s242
        %s244 = smul.u32 2, %s14
        %v245 = vld [vmem:[%s2] sm:$0xf]
        %v246 = vld [vmem:[%s236] sm:$0xf]
        %v247 = vld [vmem:[%s236 + $0x4] sm:$0xf]
        %v248 = vunpack.c.l.bf16 %v246
        %v249 = vunpack.c.l.bf16 %v247
        %v250 = vperm.slane %v245, 0
        %v251 = vmul.f32 %v248, %v250
        %v252 = vmul.f32 %v249, %v250
        %v253 = vperm.slane %v245, 1
        %v254 = vadd.f32 %v251, %v253
        %v255 = vadd.f32 %v252, %v253
        %v256 = vld [vmem:[%s206] sm:$0xf]
        %v257 = vld [vmem:[%s206 + $0x4] sm:$0xf]
        %v258 = vunpack.c.l.bf16 %v256
        %v259 = vunpack.c.l.bf16 %v257
        %v260 = vperm.slane %v245, 2
        %v261 = vmul.f32 %v258, %v260
        %v262 = vmul.f32 %v259, %v260
        %v263 = vperm.slane %v245, 3
        %v264 = vadd.f32 %v261, %v263
        %v265 = vadd.f32 %v262, %v263
        %v266 = vadd.f32 %v254, %v264
        %v267 = vadd.f32 %v255, %v265
        %v268 = vmax.f32 %v266, 0.0
        %v269 = vmax.f32 %v267, 0.0
        %270 = vst [vmem:[%s243] sm:$0xff] %v268
        %271 = vst [vmem:[%s243 + $0x8] sm:$0xff] %v269
        %s272 = smul.u32 2, %s14
        %p273 = scmp.lt.s32.totalorder %s272, 3
        %s274 = scalar_select %p273, %s272, 3
        %s275 = smul.addr %s274, 8
        %s276 = scalar_lea.vmem %s3, %s275
        // Predicated region
        $region74: #{residual_block_pallas.7} parent=68 // pred_check
          %p277 = pneg %p105
        $region75: #{residual_block_pallas.7} parent=68 // pred_check_branch
          %279 = sbr.rel (%p277) target = $region77
        $region76: #{residual_block_pallas.7} parent=68 // pred_region
          %s280 = smul.u32 2, %s14
        $region77: #{residual_block_pallas.7} parent=68 // pred_fallthru
          _
      $region69: #{residual_block_pallas.7} parent=5 // pred_fallthru
        _
      %p281 = scmp.le.s32.totalorder 2, %s9
      // Predicated region
      $region78: #{residual_block_pallas.7} parent=5 // pred_check
        %p282 = pneg %p281
      $region79: #{residual_block_pallas.7} parent=5 // pred_check_branch
        %284 = sbr.rel (%p282) target = $region81
      $region80: #{residual_block_pallas.7} parent=5 // pred_region
        %s285 = ssub.s32 %s9, 2
        // Predicated region
        $region82: #{residual_block_pallas.7} parent=80 // pred_check
          %p286 = pneg %p111
        $region83: #{residual_block_pallas.7} parent=80 // pred_check_branch
          %288 = sbr.rel (%p286) target = $region85
        $region84: #{residual_block_pallas.7} parent=80 // pred_region
          %s289 = smul.u32 2, %s15
          %p290 = scmp.lt.s32.totalorder %s289, 3
          %s291 = scalar_select %p290, %s289, 3
          %s292 = smul.addr %s291, 8
          %s293 = scalar_lea.vmem %s3, %s292
        $region85: #{residual_block_pallas.7} parent=80 // pred_fallthru
          _
      $region81: #{residual_block_pallas.7} parent=5 // pred_fallthru
        _
    $region6: #{residual_block_pallas.7} parent=1 // loop_footer
      %s13 = sadd.s32 1, %s9
    $region7: #{residual_block_pallas.7} parent=1 // loop_footer_branch
      %8 = sbr.rel target = $region3
    $region8: #{residual_block_pallas.7} parent=1 // loop_exit
      _

</llo_original>
